<compile_context>
chip_gen: v5e
topology: v5e:2x2
jax: 0.10.0
libtpu: 0.0.40
codegen_flags: <defaults>
</compile_context>

<pallas_src>
import jax
import jax.numpy as jnp
from jax.experimental import pallas as pl
from jax.experimental.pallas import tpu as pltpu

K_IN = 28 * 28         # 784 (= 98 * 8, sublane-legal; no padding needed)
H1 = 512
H2 = 256
N_OUT = 10
N_PAD = 128            # lane-dense output width


def mlp_kernel(x_ref, w1_ref, b1_ref, w2_ref, b2_ref, w3_ref, b3_ref, o_ref):
    # Fused 3-layer MLP on one batch tile. fp32 input is cast to bf16 in-vreg,
    # all matmuls run on the MXU with fp32 accumulation, bias/ReLU on the VPU;
    # activations never leave VMEM/vregs.
    x = x_ref[...].astype(jnp.bfloat16)                                 # (TB, 784)
    h1 = jnp.dot(x, w1_ref[...], preferred_element_type=jnp.float32)   # (TB, 512) f32
    h1 = jnp.maximum(h1 + b1_ref[...], 0.0).astype(jnp.bfloat16)
    h2 = jnp.dot(h1, w2_ref[...], preferred_element_type=jnp.float32)  # (TB, 256) f32
    h2 = jnp.maximum(h2 + b2_ref[...], 0.0).astype(jnp.bfloat16)
    logits = jnp.dot(h2, w3_ref[...], preferred_element_type=jnp.float32)
    logits = logits + b3_ref[...]                                       # (TB, 128) f32
    o_ref[...] = logits.astype(o_ref.dtype)                             # bf16 writeback


def _round_up(v, m):
    return ((v + m - 1) // m) * m


@jax.jit
def neural_network_forward(x, params):
    """x: (B, 28, 28) float32 -> logits (B, 10) float32."""
    w1, b1, w2, b2, w3, b3 = params  # bf16 weights (in, out), fp32 biases (1, out)
    B = x.shape[0]

    # nn.Flatten (metadata-only reshape of a contiguous array). No dtype cast
    # or K padding here: the kernel reads fp32 (B, 784) directly.
    x_flat = x.reshape(B, K_IN)

    # Batch tiling: single tile (rounded to a full sublane) up to 512 rows;
    # 512-row tiles beyond that so the "parallel" grid axis has >= 2 steps
    # (v7x megacore splits batch tiles across both TensorCores).
    b_pad = _round_up(B, 8)
    if b_pad <= 512:
        tile_b = b_pad
    else:
        tile_b = 512
        b_pad = _round_up(b_pad, tile_b)
    if b_pad != B:
        x_flat = jnp.pad(x_flat, ((0, b_pad - B), (0, 0)))
    num_tiles = b_pad // tile_b

    flops = 2 * b_pad * (K_IN * H1 + H1 * H2 + H2 * N_PAD)
    bytes_accessed = (
        x_flat.size * 4                              # fp32 activations in
        + (w1.size + w2.size + w3.size) * 2          # bf16 weights
        + (b1.size + b2.size + b3.size) * 4          # fp32 biases
        + b_pad * N_PAD * 2                          # bf16 logits out
    )

    out = pl.pallas_call(
        mlp_kernel,
        out_shape=jax.ShapeDtypeStruct((b_pad, N_PAD), jnp.bfloat16),
        grid=(num_tiles,),
        in_specs=[
            pl.BlockSpec((tile_b, K_IN), lambda i: (i, 0)),   # x: tiled over batch
            pl.BlockSpec((K_IN, H1), lambda i: (0, 0)),        # w1: VMEM-resident
            pl.BlockSpec((1, H1), lambda i: (0, 0)),           # b1
            pl.BlockSpec((H1, H2), lambda i: (0, 0)),          # w2
            pl.BlockSpec((1, H2), lambda i: (0, 0)),           # b2
            pl.BlockSpec((H2, N_PAD), lambda i: (0, 0)),       # w3 (zero-padded cols)
            pl.BlockSpec((1, N_PAD), lambda i: (0, 0)),        # b3 (zero-padded cols)
        ],
        out_specs=pl.BlockSpec((tile_b, N_PAD), lambda i: (i, 0)),
        compiler_params=pltpu.CompilerParams(
            dimension_semantics=("parallel",),
        ),
        cost_estimate=pl.CostEstimate(
            flops=flops, transcendentals=0, bytes_accessed=bytes_accessed
        ),
    )(x_flat, w1, b1, w2, b2, w3, b3)

    # Undo batch/lane padding; return fp32 logits like the PyTorch module.
    return out[:B, :N_OUT].astype(jnp.float32)


def init_params(key):
    """Deterministic synthetic parameters with nn.Linear-style init, stored in
    the kernel's layout: weights (in, out) bf16, biases (1, out) f32.  Only the
    final layer's output dim is zero-padded 10 -> 128 for lane-dense stores."""
    ks = jax.random.split(key, 6)

    def lin(kw, kb, fan_in, fan_out):
        bound = 1.0 / jnp.sqrt(fan_in)
        w = jax.random.uniform(kw, (fan_in, fan_out), jnp.float32, -bound, bound)
        b = jax.random.uniform(kb, (1, fan_out), jnp.float32, -bound, bound)
        return w, b

    w1, b1 = lin(ks[0], ks[1], K_IN, H1)
    w2, b2 = lin(ks[2], ks[3], H1, H2)
    w3, b3 = lin(ks[4], ks[5], H2, N_OUT)

    w3 = jnp.pad(w3, ((0, 0), (0, N_PAD - N_OUT)))
    b3 = jnp.pad(b3, ((0, 0), (0, N_PAD - N_OUT)))

    return (
        w1.astype(jnp.bfloat16), b1,
        w2.astype(jnp.bfloat16), b2,
        w3.astype(jnp.bfloat16), b3,
    )


if __name__ == "__main__":
    key = jax.random.PRNGKey(0)
    k_x, k_p = jax.random.split(key)

    # Matches the PyTorch driver: X = torch.rand(4, 28, 28)
    x = jax.random.uniform(k_x, (4, 28, 28), jnp.float32)
    params = init_params(k_p)

    logits = neural_network_forward(x, params)
    logits = jax.block_until_ready(logits)

    # Pure-JAX reference with the same bf16-feed / fp32-accumulate path.
    w1, b1, w2, b2, w3, b3 = params
    xf = x.reshape(4, K_IN).astype(jnp.bfloat16)
    h1 = jnp.maximum(
        jnp.dot(xf, w1, preferred_element_type=jnp.float32) + b1, 0.0
    ).astype(jnp.bfloat16)
    h2 = jnp.maximum(
        jnp.dot(h1, w2, preferred_element_type=jnp.float32) + b2, 0.0
    ).astype(jnp.bfloat16)
    ref = (jnp.dot(h2, w3, preferred_element_type=jnp.float32) + b3)
    ref = ref.astype(jnp.bfloat16).astype(jnp.float32)[:, :N_OUT]

    assert logits.shape == (4, N_OUT)
    assert jnp.allclose(logits, ref, atol=2e-2, rtol=2e-2), (
        jnp.max(jnp.abs(logits - ref))
    )

    print("KERNEL_OK")
</pallas_src>

<mosaic_0001>
module attributes {stable_mosaic.version = 11 : i64} {
  func.func @mlp_kernel(%arg0: i32, %arg1: memref<8x784xf32, #tpu.memory_space<vmem>>, %arg2: memref<784x512xbf16, #tpu.memory_space<vmem>>, %arg3: memref<1x512xf32, #tpu.memory_space<vmem>>, %arg4: memref<512x256xbf16, #tpu.memory_space<vmem>>, %arg5: memref<1x256xf32, #tpu.memory_space<vmem>>, %arg6: memref<256x128xbf16, #tpu.memory_space<vmem>>, %arg7: memref<1x128xf32, #tpu.memory_space<vmem>>, %arg8: memref<8x128xbf16, #tpu.memory_space<vmem>>) attributes {dimension_semantics = [#tpu.dimension_semantics<parallel>], iteration_bounds = array<i64: 1>, scalar_prefetch = 0 : i64, scratch_operands = 0 : i64, tpu.core_type = #tpu.core_type<tc>, window_params = [{transform_indices = @transform_0, window_bounds = array<i64: 8, 784>}, {pipeline_mode = #tpu.pipeline_mode<synchronous>, transform_indices = @transform_1, window_bounds = array<i64: 784, 512>}, {pipeline_mode = #tpu.pipeline_mode<synchronous>, transform_indices = @transform_2, window_bounds = array<i64: 1, 512>}, {pipeline_mode = #tpu.pipeline_mode<synchronous>, transform_indices = @transform_3, window_bounds = array<i64: 512, 256>}, {pipeline_mode = #tpu.pipeline_mode<synchronous>, transform_indices = @transform_4, window_bounds = array<i64: 1, 256>}, {pipeline_mode = #tpu.pipeline_mode<synchronous>, transform_indices = @transform_5, window_bounds = array<i64: 256, 128>}, {pipeline_mode = #tpu.pipeline_mode<synchronous>, transform_indices = @transform_6, window_bounds = array<i64: 1, 128>}, {transform_indices = @transform_7, window_bounds = array<i64: 8, 128>}]} {
    %c0 = arith.constant 0 : index
    %c0_0 = arith.constant 0 : index
    %0 = vector.load %arg1[%c0, %c0_0] : memref<8x784xf32, #tpu.memory_space<vmem>>, vector<8x784xf32>
    %1 = arith.truncf %0 : vector<8x784xf32> to vector<8x784xbf16>
    %c0_1 = arith.constant 0 : index
    %c0_2 = arith.constant 0 : index
    %2 = vector.load %arg2[%c0_1, %c0_2] : memref<784x512xbf16, #tpu.memory_space<vmem>>, vector<784x512xbf16>
    %cst = arith.constant dense<0.000000e+00> : vector<8x512xf32>
    %3 = tpu.matmul %1, %2, %cst {dimension_numbers = #tpu.dot_dimension_numbers<[1], [0], [0], [1], [0, 0, 1, 1], [], []>} : vector<8x784xbf16>, vector<784x512xbf16>, vector<8x512xf32> -> vector<8x512xf32>
    %c0_3 = arith.constant 0 : index
    %c0_4 = arith.constant 0 : index
    %4 = vector.load %arg3[%c0_3, %c0_4] : memref<1x512xf32, #tpu.memory_space<vmem>>, vector<1x512xf32>
    %5 = vector.broadcast %4 : vector<1x512xf32> to vector<8x512xf32>
    %6 = arith.addf %3, %5 : vector<8x512xf32>
    %cst_5 = arith.constant 0.000000e+00 : f32
    %7 = vector.broadcast %cst_5 : f32 to vector<8x512xf32>
    %8 = arith.maximumf %6, %7 : vector<8x512xf32>
    %9 = arith.truncf %8 : vector<8x512xf32> to vector<8x512xbf16>
    %c0_6 = arith.constant 0 : index
    %c0_7 = arith.constant 0 : index
    %10 = vector.load %arg4[%c0_6, %c0_7] : memref<512x256xbf16, #tpu.memory_space<vmem>>, vector<512x256xbf16>
    %cst_8 = arith.constant dense<0.000000e+00> : vector<8x256xf32>
    %11 = tpu.matmul %9, %10, %cst_8 {dimension_numbers = #tpu.dot_dimension_numbers<[1], [0], [0], [1], [0, 0, 1, 1], [], []>} : vector<8x512xbf16>, vector<512x256xbf16>, vector<8x256xf32> -> vector<8x256xf32>
    %c0_9 = arith.constant 0 : index
    %c0_10 = arith.constant 0 : index
    %12 = vector.load %arg5[%c0_9, %c0_10] : memref<1x256xf32, #tpu.memory_space<vmem>>, vector<1x256xf32>
    %13 = vector.broadcast %12 : vector<1x256xf32> to vector<8x256xf32>
    %14 = arith.addf %11, %13 : vector<8x256xf32>
    %cst_11 = arith.constant 0.000000e+00 : f32
    %15 = vector.broadcast %cst_11 : f32 to vector<8x256xf32>
    %16 = arith.maximumf %14, %15 : vector<8x256xf32>
    %17 = arith.truncf %16 : vector<8x256xf32> to vector<8x256xbf16>
    %c0_12 = arith.constant 0 : index
    %c0_13 = arith.constant 0 : index
    %18 = vector.load %arg6[%c0_12, %c0_13] : memref<256x128xbf16, #tpu.memory_space<vmem>>, vector<256x128xbf16>
    %cst_14 = arith.constant dense<0.000000e+00> : vector<8x128xf32>
    %19 = tpu.matmul %17, %18, %cst_14 {dimension_numbers = #tpu.dot_dimension_numbers<[1], [0], [0], [1], [0, 0, 1, 1], [], []>} : vector<8x256xbf16>, vector<256x128xbf16>, vector<8x128xf32> -> vector<8x128xf32>
    %c0_15 = arith.constant 0 : index
    %c0_16 = arith.constant 0 : index
    %20 = vector.load %arg7[%c0_15, %c0_16] : memref<1x128xf32, #tpu.memory_space<vmem>>, vector<1x128xf32>
    %21 = vector.broadcast %20 : vector<1x128xf32> to vector<8x128xf32>
    %22 = arith.addf %19, %21 : vector<8x128xf32>
    %23 = arith.truncf %22 : vector<8x128xf32> to vector<8x128xbf16>
    %c0_17 = arith.constant 0 : index
    %c0_18 = arith.constant 0 : index
    %24 = vector.load %arg8[%c0_17, %c0_18] : memref<8x128xbf16, #tpu.memory_space<vmem>>, vector<8x128xbf16>
    tpu.vector_store %arg8[%c0_17, %c0_18], %23 {strides = array<i32>} : memref<8x128xbf16, #tpu.memory_space<vmem>>, vector<8x128xbf16>,
    return
  }
  func.func @transform_0(%arg0: i32) -> (i32, i32) {
    %c0_i32 = arith.constant 0 : i32
    %c0_i32_0 = arith.constant 0 : i32
    return %arg0, %c0_i32 : i32, i32
  }
  func.func @transform_1(%arg0: i32) -> (i32, i32) {
    %c0_i32 = arith.constant 0 : i32
    %c0_i32_0 = arith.constant 0 : i32
    %c0_i32_1 = arith.constant 0 : i32
    return %c0_i32, %c0_i32_0 : i32, i32
  }
  func.func @transform_2(%arg0: i32) -> (i32, i32) {
    %c0_i32 = arith.constant 0 : i32
    %c0_i32_0 = arith.constant 0 : i32
    %c0_i32_1 = arith.constant 0 : i32
    return %c0_i32, %c0_i32_0 : i32, i32
  }
  func.func @transform_3(%arg0: i32) -> (i32, i32) {
    %c0_i32 = arith.constant 0 : i32
    %c0_i32_0 = arith.constant 0 : i32
    %c0_i32_1 = arith.constant 0 : i32
    return %c0_i32, %c0_i32_0 : i32, i32
  }
  func.func @transform_4(%arg0: i32) -> (i32, i32) {
    %c0_i32 = arith.constant 0 : i32
    %c0_i32_0 = arith.constant 0 : i32
    %c0_i32_1 = arith.constant 0 : i32
    return %c0_i32, %c0_i32_0 : i32, i32
  }
  func.func @transform_5(%arg0: i32) -> (i32, i32) {
    %c0_i32 = arith.constant 0 : i32
    %c0_i32_0 = arith.constant 0 : i32
    %c0_i32_1 = arith.constant 0 : i32
    return %c0_i32, %c0_i32_0 : i32, i32
  }
  func.func @transform_6(%arg0: i32) -> (i32, i32) {
    %c0_i32 = arith.constant 0 : i32
    %c0_i32_0 = arith.constant 0 : i32
    %c0_i32_1 = arith.constant 0 : i32
    return %c0_i32, %c0_i32_0 : i32, i32
  }
  func.func @transform_7(%arg0: i32) -> (i32, i32) {
    %c0_i32 = arith.constant 0 : i32
    %c0_i32_0 = arith.constant 0 : i32
    return %arg0, %c0_i32 : i32, i32
  }
}

</mosaic_0001>

<llo_original>
// kernel: neural_network_forward.1
$region0: #{neural_network_forward.1}
  #allocation0 [shape = 'u32[]', space=smem, size = 0x4, offset = 0x4, fixed_abs, tag = 'smem constant byte address 0x4 - core index']
  #allocation1 [shape = 'u32[72,128]{1,0:T(1,128)}', space=vmem, size = 0x9000, scoped, tag = 'internal scratch']
  %s0 = inlined_call_operand.vmem [shape: f32[8,784], index: 0, kind: input, shape index: {}]
  %s1 = inlined_call_operand.hbm [shape: bf16[784,512], index: 1, kind: input, shape index: {}]
  %s2 = inlined_call_operand.vmem [shape: f32[1,512], index: 2, kind: input, shape index: {}]
  %s3 = inlined_call_operand.hbm [shape: bf16[512,256], index: 3, kind: input, shape index: {}]
  %s4 = inlined_call_operand.vmem [shape: f32[1,256], index: 4, kind: input, shape index: {}]
  %s5 = inlined_call_operand.vmem [shape: bf16[256,128], index: 5, kind: input, shape index: {}]
  %s6 = inlined_call_operand.vmem [shape: f32[1,128], index: 6, kind: input, shape index: {}]
  %s7 = inlined_call_operand.vmem [shape: bf16[8,128], index: 7, kind: output, shape index: {}]
  %s8 = sld [smem:[#allocation0]]
  $region46: #{neural_network_forward.1} parent=0
    _
  %s10 = ssub.s32 1, %s8
  %s11 = scalar_select 0, %s10, %s8
  $region1: #{neural_network_forward.1} parent=0
    #allocation2 [shape = 'u8[802816]{0}', space=vmem, size = 0xc4000, scoped, tag = 'input window, operand 1, single buffered']
    #allocation3 [shape = 's32[1]{0}', space=sflag, size = 0x4, scoped, tag = 'scoped memory for neural_network_forward.1']
    #allocation4 [shape = 'u8[262144]{0}', space=vmem, size = 0x40000, scoped, tag = 'input window, operand 3, single buffered']
    #allocation5 [shape = 's32[1]{0}', space=sflag, size = 0x4, scoped, tag = 'scoped memory for neural_network_forward.1']
    %12 = vsyncpa [#allocation3], 0
    %13 = vsyncpa [#allocation5], 0
    // Predicated region
    $region2: #{neural_network_forward.1} parent=1 // pred_check
      _
    $region3: #{neural_network_forward.1} parent=1 // pred_check_branch
      %15 = sbr.rel (0) target = $region5
    $region4: #{neural_network_forward.1} parent=1 // pred_region
      _
    $region5: #{neural_network_forward.1} parent=1 // pred_fallthru
      _
    // Predicated region
    $region6: #{neural_network_forward.1} parent=1 // pred_check
      _
    $region7: #{neural_network_forward.1} parent=1 // pred_check_branch
      %17 = sbr.rel (0) target = $region9
    $region8: #{neural_network_forward.1} parent=1 // pred_region
      %19 = vsyncadd [#allocation3], 0
      %s20 = sshll.u32 %s1, 4
      %s21 = int_to_ptr.hbm [resolvable:$true] %s20
      %s22 = sshll.u32 [#allocation2], 4
      %s23 = int_to_ptr.vmem [resolvable:$true] %s22
      %28 = dma.hbm_to_vmem [thread:$0]  %s21, 25088, %s23, [#allocation3], 256, 256, 16
    $region9: #{neural_network_forward.1} parent=1 // pred_fallthru
      _
    // Predicated region
    $region10: #{neural_network_forward.1} parent=1 // pred_check
      _
    $region11: #{neural_network_forward.1} parent=1 // pred_check_branch
      %30 = sbr.rel (0) target = $region13
    $region12: #{neural_network_forward.1} parent=1 // pred_region
      _
    $region13: #{neural_network_forward.1} parent=1 // pred_fallthru
      _
    // Predicated region
    $region14: #{neural_network_forward.1} parent=1 // pred_check
      _
    $region15: #{neural_network_forward.1} parent=1 // pred_check_branch
      %32 = sbr.rel (0) target = $region17
    $region16: #{neural_network_forward.1} parent=1 // pred_region
      %34 = vsyncadd [#allocation5], 0
      %s35 = sshll.u32 %s3, 4
      %s36 = int_to_ptr.hbm [resolvable:$true] %s35
      %s37 = sshll.u32 [#allocation4], 4
      %s38 = int_to_ptr.vmem [resolvable:$true] %s37
      %43 = dma.hbm_to_vmem [thread:$0]  %s36, 8192, %s38, [#allocation5], 128, 128, 8
    $region17: #{neural_network_forward.1} parent=1 // pred_fallthru
      _
    // Predicated region
    $region18: #{neural_network_forward.1} parent=1 // pred_check
      _
    $region19: #{neural_network_forward.1} parent=1 // pred_check_branch
      %45 = sbr.rel (0) target = $region21
    $region20: #{neural_network_forward.1} parent=1 // pred_region
      _
    $region21: #{neural_network_forward.1} parent=1 // pred_fallthru
      _
    // Predicated region
    $region22: #{neural_network_forward.1} parent=1 // pred_check
      _
    $region23: #{neural_network_forward.1} parent=1 // pred_check_branch
      %47 = sbr.rel (0) target = $region25
    $region24: #{neural_network_forward.1} parent=1 // pred_region
      _
    $region25: #{neural_network_forward.1} parent=1 // pred_fallthru
      _
    // Predicated region
    $region26: #{neural_network_forward.1} parent=1 // pred_check
      _
    $region27: #{neural_network_forward.1} parent=1 // pred_check_branch
      %49 = sbr.rel (0) target = $region29
    $region28: #{neural_network_forward.1} parent=1 // pred_region
      _
    $region29: #{neural_network_forward.1} parent=1 // pred_fallthru
      _
    // Predicated region
    $region30: #{neural_network_forward.1} parent=1 // pred_check
      _
    $region31: #{neural_network_forward.1} parent=1 // pred_check_branch
      %51 = sbr.rel (0) target = $region33
    $region32: #{neural_network_forward.1} parent=1 // pred_region
      %53 = dma.done [#allocation3], 25088
    $region33: #{neural_network_forward.1} parent=1 // pred_fallthru
      _
    // Predicated region
    $region34: #{neural_network_forward.1} parent=1 // pred_check
      _
    $region35: #{neural_network_forward.1} parent=1 // pred_check_branch
      %55 = sbr.rel (0) target = $region37
    $region36: #{neural_network_forward.1} parent=1 // pred_region
      %57 = dma.done [#allocation5], 8192
    $region37: #{neural_network_forward.1} parent=1 // pred_fallthru
      _
    %v59 = vld [vmem:[%s0] sm:$0xff]
    %v60 = vld [vmem:[%s0 + $0x8] sm:$0xff]
    %v61 = vld [vmem:[%s0 + $0x10] sm:$0xff]
    %v62 = vld [vmem:[%s0 + $0x18] sm:$0xff]
    %v63 = vld [vmem:[%s0 + $0x20] sm:$0xff]
    %v64 = vld [vmem:[%s0 + $0x28] sm:$0xff]
    %v65 = vld [vmem:[%s0 + $0x30] sm:$0xff]
    %v66 = vpack.c.bf16 %v59, %v59
    %v67 = vpack.c.bf16 %v60, %v60
    %v68 = vpack.c.bf16 %v61, %v61
    %v69 = vpack.c.bf16 %v62, %v62
    %v70 = vpack.c.bf16 %v63, %v63
    %v71 = vpack.c.bf16 %v64, %v64
    %v72 = vpack.c.bf16 %v65, %v65
    %v73 = vld [vmem:[#allocation2] sm:$0xff]
    %v74 = vld [vmem:[#allocation2 + $0x8] sm:$0xff]
    %v75 = vld [vmem:[#allocation2 + $0x10] sm:$0xff]
    %v76 = vld [vmem:[#allocation2 + $0x18] sm:$0xff]
    %v77 = vld [vmem:[#allocation2 + $0x20] sm:$0xff]
    %v78 = vld [vmem:[#allocation2 + $0x28] sm:$0xff]
    %v79 = vld [vmem:[#allocation2 + $0x30] sm:$0xff]
    %v80 = vld [vmem:[#allocation2 + $0x38] sm:$0xff]
    %v81 = vld [vmem:[#allocation2 + $0x40] sm:$0xff]
    %v82 = vld [vmem:[#allocation2 + $0x48] sm:$0xff]
    %v83 = vld [vmem:[#allocation2 + $0x50] sm:$0xff]
    %v84 = vld [vmem:[#allocation2 + $0x58] sm:$0xff]
    %v85 = vld [vmem:[#allocation2 + $0x60] sm:$0xff]
    %v86 = vld [vmem:[#allocation2 + $0x68] sm:$0xff]
    %v87 = vld [vmem:[#allocation2 + $0x70] sm:$0xff]
    %v88 = vld [vmem:[#allocation2 + $0x78] sm:$0xff]
    %v89 = vld [vmem:[#allocation2 + $0x80] sm:$0xff]
    %v90 = vld [vmem:[#allocation2 + $0x88] sm:$0xff]
    %v91 = vld [vmem:[#allocation2 + $0x90] sm:$0xff]
    %v92 = vld [vmem:[#allocation2 + $0x98] sm:$0xff]
    %v93 = vld [vmem:[#allocation2 + $0xa0] sm:$0xff]
    %v94 = vld [vmem:[#allocation2 + $0xa8] sm:$0xff]
    %v95 = vld [vmem:[#allocation2 + $0xb0] sm:$0xff]
    %v96 = vld [vmem:[#allocation2 + $0xb8] sm:$0xff]
    %v97 = vld [vmem:[#allocation2 + $0xc0] sm:$0xff]
    %v98 = vld [vmem:[#allocation2 + $0xc8] sm:$0xff]
    %v99 = vld [vmem:[#allocation2 + $0xd0] sm:$0xff]
    %v100 = vld [vmem:[#allocation2 + $0xd8] sm:$0xff]
    %v101 = vld [vmem:[#allocation2 + $0xe0] sm:$0xff]
    %v102 = vld [vmem:[#allocation2 + $0xe8] sm:$0xff]
    %v103 = vld [vmem:[#allocation2 + $0xf0] sm:$0xff]
    %v104 = vld [vmem:[#allocation2 + $0xf8] sm:$0xff]
    %v105 = vld [vmem:[#allocation2 + $0x100] sm:$0xff]
    %v106 = vld [vmem:[#allocation2 + $0x108] sm:$0xff]
    %v107 = vld [vmem:[#allocation2 + $0x110] sm:$0xff]
    %v108 = vld [vmem:[#allocation2 + $0x118] sm:$0xff]
    %v109 = vld [vmem:[#allocation2 + $0x120] sm:$0xff]
    %v110 = vld [vmem:[#allocation2 + $0x128] sm:$0xff]
    %v111 = vld [vmem:[#allocation2 + $0x130] sm:$0xff]
    %v112 = vld [vmem:[#allocation2 + $0x138] sm:$0xff]
    %v113 = vld [vmem:[#allocation2 + $0x140] sm:$0xff]
    %v114 = vld [vmem:[#allocation2 + $0x148] sm:$0xff]
    %v115 = vld [vmem:[#allocation2 + $0x150] sm:$0xff]
    %v116 = vld [vmem:[#allocation2 + $0x158] sm:$0xff]
    %v117 = vld [vmem:[#allocation2 + $0x160] sm:$0xff]
    %v118 = vld [vmem:[#allocation2 + $0x168] sm:$0xff]
    %v119 = vld [vmem:[#allocation2 + $0x170] sm:$0xff]
    %v120 = vld [vmem:[#allocation2 + $0x178] sm:$0xff]
    %v121 = vld [vmem:[#allocation2 + $0x180] sm:$0xff]
    %v122 = vld [vmem:[#allocation2 + $0x188] sm:$0xff]
    %v123 = vld [vmem:[#allocation2 + $0x190] sm:$0xff]
    %v124 = vld [vmem:[#allocation2 + $0x198] sm:$0xff]
    %v125 = vld [vmem:[#allocation2 + $0x1a0] sm:$0xff]
    %v126 = vld [vmem:[#allocation2 + $0x1a8] sm:$0xff]
    %v127 = vld [vmem:[#allocation2 + $0x1b0] sm:$0xff]
    %v128 = vld [vmem:[#allocation2 + $0x1b8] sm:$0xff]
    %v129 = vld [vmem:[#allocation2 + $0x1c0] sm:$0xff]
    %v130 = vld [vmem:[#allocation2 + $0x1c8] sm:$0xff]
    %v131 = vld [vmem:[#allocation2 + $0x1d0] sm:$0xff]
    %v132 = vld [vmem:[#allocation2 + $0x1d8] sm:$0xff]
    %v133 = vld [vmem:[#allocation2 + $0x1e0] sm:$0xff]
    %v134 = vld [vmem:[#allocation2 + $0x1e8] sm:$0xff]
    %v135 = vld [vmem:[#allocation2 + $0x1f0] sm:$0xff]
    %v136 = vld [vmem:[#allocation2 + $0x1f8] sm:$0xff]
    %v137 = vld [vmem:[#allocation2 + $0x200] sm:$0xff]
    %v138 = vld [vmem:[#allocation2 + $0x208] sm:$0xff]
    %v139 = vld [vmem:[#allocation2 + $0x210] sm:$0xff]
    %v140 = vld [vmem:[#allocation2 + $0x218] sm:$0xff]
    %v141 = vld [vmem:[#allocation2 + $0x220] sm:$0xff]
    %v142 = vld [vmem:[#allocation2 + $0x228] sm:$0xff]
    %v143 = vld [vmem:[#allocation2 + $0x230] sm:$0xff]
    %v144 = vld [vmem:[#allocation2 + $0x238] sm:$0xff]
    %v145 = vld [vmem:[#allocation2 + $0x240] sm:$0xff]
    %v146 = vld [vmem:[#allocation2 + $0x248] sm:$0xff]
    %v147 = vld [vmem:[#allocation2 + $0x250] sm:$0xff]
    %v148 = vld [vmem:[#allocation2 + $0x258] sm:$0xff]
    %v149 = vld [vmem:[#allocation2 + $0x260] sm:$0xff]
    %v150 = vld [vmem:[#allocation2 + $0x268] sm:$0xff]
    %v151 = vld [vmem:[#allocation2 + $0x270] sm:$0xff]
    %v152 = vld [vmem:[#allocation2 + $0x278] sm:$0xff]
    %v153 = vld [vmem:[#allocation2 + $0x280] sm:$0xff]
    %v154 = vld [vmem:[#allocation2 + $0x288] sm:$0xff]
    %v155 = vld [vmem:[#allocation2 + $0x290] sm:$0xff]
    %v156 = vld [vmem:[#allocation2 + $0x298] sm:$0xff]
    %v157 = vld [vmem:[#allocation2 + $0x2a0] sm:$0xff]
    %v158 = vld [vmem:[#allocation2 + $0x2a8] sm:$0xff]
    %v159 = vld [vmem:[#allocation2 + $0x2b0] sm:$0xff]
    %v160 = vld [vmem:[#allocation2 + $0x2b8] sm:$0xff]
    %v161 = vld [vmem:[#allocation2 + $0x2c0] sm:$0xff]
    %v162 = vld [vmem:[#allocation2 + $0x2c8] sm:$0xff]
    %v163 = vld [vmem:[#allocation2 + $0x2d0] sm:$0xff]
    %v164 = vld [vmem:[#allocation2 + $0x2d8] sm:$0xff]
    %v165 = vld [vmem:[#allocation2 + $0x2e0] sm:$0xff]
    %v166 = vld [vmem:[#allocation2 + $0x2e8] sm:$0xff]
    %v167 = vld [vmem:[#allocation2 + $0x2f0] sm:$0xff]
    %v168 = vld [vmem:[#allocation2 + $0x2f8] sm:$0xff]
    %v169 = vld [vmem:[#allocation2 + $0x300] sm:$0xff]
    %v170 = vld [vmem:[#allocation2 + $0x308] sm:$0xff]
    %v171 = vld [vmem:[#allocation2 + $0x310] sm:$0xff]
    %v172 = vld [vmem:[#allocation2 + $0x318] sm:$0xff]
    %v173 = vld [vmem:[#allocation2 + $0x320] sm:$0xff]
    %v174 = vld [vmem:[#allocation2 + $0x328] sm:$0xff]
    %v175 = vld [vmem:[#allocation2 + $0x330] sm:$0xff]
    %v176 = vld [vmem:[#allocation2 + $0x338] sm:$0xff]
    %v177 = vld [vmem:[#allocation2 + $0x340] sm:$0xff]
    %v178 = vld [vmem:[#allocation2 + $0x348] sm:$0xff]
    %v179 = vld [vmem:[#allocation2 + $0x350] sm:$0xff]
    %v180 = vld [vmem:[#allocation2 + $0x358] sm:$0xff]
    %v181 = vld [vmem:[#allocation2 + $0x360] sm:$0xff]
    %v182 = vld [vmem:[#allocation2 + $0x368] sm:$0xff]
    %v183 = vld [vmem:[#allocation2 + $0x370] sm:$0xff]
    %v184 = vld [vmem:[#allocation2 + $0x378] sm:$0xff]
    %v185 = vld [vmem:[#allocation2 + $0x380] sm:$0xff]
    %v186 = vld [vmem:[#allocation2 + $0x388] sm:$0xff]
    %v187 = vld [vmem:[#allocation2 + $0x390] sm:$0xff]
    %v188 = vld [vmem:[#allocation2 + $0x398] sm:$0xff]
    %v189 = vld [vmem:[#allocation2 + $0x3a0] sm:$0xff]
    %v190 = vld [vmem:[#allocation2 + $0x3a8] sm:$0xff]
    %v191 = vld [vmem:[#allocation2 + $0x3b0] sm:$0xff]
    %v192 = vld [vmem:[#allocation2 + $0x3b8] sm:$0xff]
    %v193 = vld [vmem:[#allocation2 + $0x3c0] sm:$0xff]
    %v194 = vld [vmem:[#allocation2 + $0x3c8] sm:$0xff]
    %v195 = vld [vmem:[#allocation2 + $0x3d0] sm:$0xff]
    %v196 = vld [vmem:[#allocation2 + $0x3d8] sm:$0xff]
    %v197 = vld [vmem:[#allocation2 + $0x3e0] sm:$0xff]
    %v198 = vld [vmem:[#allocation2 + $0x3e8] sm:$0xff]
    %v199 = vld [vmem:[#allocation2 + $0x3f0] sm:$0xff]
    %v200 = vld [vmem:[#allocation2 + $0x3f8] sm:$0xff]
    %v201 = vld [vmem:[#allocation2 + $0x400] sm:$0xff]
    %v202 = vld [vmem:[#allocation2 + $0x408] sm:$0xff]
    %v203 = vld [vmem:[#allocation2 + $0x410] sm:$0xff]
    %v204 = vld [vmem:[#allocation2 + $0x418] sm:$0xff]
    %v205 = vld [vmem:[#allocation2 + $0x420] sm:$0xff]
    %v206 = vld [vmem:[#allocation2 + $0x428] sm:$0xff]
    %v207 = vld [vmem:[#allocation2 + $0x430] sm:$0xff]
    %v208 = vld [vmem:[#allocation2 + $0x438] sm:$0xff]
    %v209 = vld [vmem:[#allocation2 + $0x440] sm:$0xff]
    %v210 = vld [vmem:[#allocation2 + $0x448] sm:$0xff]
    %v211 = vld [vmem:[#allocation2 + $0x450] sm:$0xff]
    %v212 = vld [vmem:[#allocation2 + $0x458] sm:$0xff]
    %v213 = vld [vmem:[#allocation2 + $0x460] sm:$0xff]
    %v214 = vld [vmem:[#allocation2 + $0x468] sm:$0xff]
    %v215 = vld [vmem:[#allocation2 + $0x470] sm:$0xff]
    %v216 = vld [vmem:[#allocation2 + $0x478] sm:$0xff]
    %v217 = vld [vmem:[#allocation2 + $0x480] sm:$0xff]
    %v218 = vld [vmem:[#allocation2 + $0x488] sm:$0xff]
    %v219 = vld [vmem:[#allocation2 + $0x490] sm:$0xff]
    %v220 = vld [vmem:[#allocation2 + $0x498] sm:$0xff]
    %v221 = vld [vmem:[#allocation2 + $0x4a0] sm:$0xff]
    %v222 = vld [vmem:[#allocation2 + $0x4a8] sm:$0xff]
    %v223 = vld [vmem:[#allocation2 + $0x4b0] sm:$0xff]
    %v224 = vld [vmem:[#allocation2 + $0x4b8] sm:$0xff]
    %v225 = vld [vmem:[#allocation2 + $0x4c0] sm:$0xff]
    %v226 = vld [vmem:[#allocation2 + $0x4c8] sm:$0xff]
    %v227 = vld [vmem:[#allocation2 + $0x4d0] sm:$0xff]
    %v228 = vld [vmem:[#allocation2 + $0x4d8] sm:$0xff]
    %v229 = vld [vmem:[#allocation2 + $0x4e0] sm:$0xff]
    %v230 = vld [vmem:[#allocation2 + $0x4e8] sm:$0xff]
    %v231 = vld [vmem:[#allocation2 + $0x4f0] sm:$0xff]
    %v232 = vld [vmem:[#allocation2 + $0x4f8] sm:$0xff]
    %v233 = vld [vmem:[#allocation2 + $0x500] sm:$0xff]
    %v234 = vld [vmem:[#allocation2 + $0x508] sm:$0xff]
    %v235 = vld [vmem:[#allocation2 + $0x510] sm:$0xff]
    %v236 = vld [vmem:[#allocation2 + $0x518] sm:$0xff]
    %v237 = vld [vmem:[#allocation2 + $0x520] sm:$0xff]
    %v238 = vld [vmem:[#allocation2 + $0x528] sm:$0xff]
    %v239 = vld [vmem:[#allocation2 + $0x530] sm:$0xff]
    %v240 = vld [vmem:[#allocation2 + $0x538] sm:$0xff]
    %v241 = vld [vmem:[#allocation2 + $0x540] sm:$0xff]
    %v242 = vld [vmem:[#allocation2 + $0x548] sm:$0xff]
    %v243 = vld [vmem:[#allocation2 + $0x550] sm:$0xff]
    %v244 = vld [vmem:[#allocation2 + $0x558] sm:$0xff]
    %v245 = vld [vmem:[#allocation2 + $0x560] sm:$0xff]
    %v246 = vld [vmem:[#allocation2 + $0x568] sm:$0xff]
    %v247 = vld [vmem:[#allocation2 + $0x570] sm:$0xff]
    %v248 = vld [vmem:[#allocation2 + $0x578] sm:$0xff]
    %v249 = vld [vmem:[#allocation2 + $0x580] sm:$0xff]
    %v250 = vld [vmem:[#allocation2 + $0x588] sm:$0xff]
    %v251 = vld [vmem:[#allocation2 + $0x590] sm:$0xff]
    %v252 = vld [vmem:[#allocation2 + $0x598] sm:$0xff]
    %v253 = vld [vmem:[#allocation2 + $0x5a0] sm:$0xff]
    %v254 = vld [vmem:[#allocation2 + $0x5a8] sm:$0xff]
    %v255 = vld [vmem:[#allocation2 + $0x5b0] sm:$0xff]
    %v256 = vld [vmem:[#allocation2 + $0x5b8] sm:$0xff]
    %v257 = vld [vmem:[#allocation2 + $0x5c0] sm:$0xff]
    %v258 = vld [vmem:[#allocation2 + $0x5c8] sm:$0xff]
    %v259 = vld [vmem:[#allocation2 + $0x5d0] sm:$0xff]
    %v260 = vld [vmem:[#allocation2 + $0x5d8] sm:$0xff]
    %v261 = vld [vmem:[#allocation2 + $0x5e0] sm:$0xff]
    %v262 = vld [vmem:[#allocation2 + $0x5e8] sm:$0xff]
    %v263 = vld [vmem:[#allocation2 + $0x5f0] sm:$0xff]
    %v264 = vld [vmem:[#allocation2 + $0x5f8] sm:$0xff]
    %v265 = vld [vmem:[#allocation2 + $0x600] sm:$0xff]
    %v266 = vld [vmem:[#allocation2 + $0x608] sm:$0xff]
    %v267 = vld [vmem:[#allocation2 + $0x610] sm:$0xff]
    %v268 = vld [vmem:[#allocation2 + $0x618] sm:$0xff]
    %v269 = vld [vmem:[%s2] sm:$0xf]
    %v271 = vperm.slane %v269, 0
    %v272 = vperm.slane %v269, 1
    %v273 = vperm.slane %v269, 2
    %v274 = vperm.slane %v269, 3
    %v475 = vunpack.c.l.b16 %v73
    %v476 = vunpack.c.h.b16 %v73
    %v477 = vunpack.c.l.b16 %v74
    %v478 = vunpack.c.h.b16 %v74
    %v479 = vunpack.c.l.b16 %v75
    %v480 = vunpack.c.h.b16 %v75
    %v481 = vunpack.c.l.b16 %v76
    %v482 = vunpack.c.h.b16 %v76
    %v483 = vunpack.c.l.b16 %v77
    %v484 = vunpack.c.h.b16 %v77
    %v485 = vunpack.c.l.b16 %v78
    %v486 = vunpack.c.h.b16 %v78
    %v487 = vunpack.c.l.b16 %v79
    %v488 = vunpack.c.h.b16 %v79
    %v489 = vunpack.c.l.b16 %v80
    %v490 = vunpack.c.h.b16 %v80
    %v491 = vunpack.c.l.b16 %v81
    %v492 = vunpack.c.h.b16 %v81
    %v493 = vunpack.c.l.b16 %v82
    %v494 = vunpack.c.h.b16 %v82
    %v495 = vunpack.c.l.b16 %v83
    %v496 = vunpack.c.h.b16 %v83
    %v497 = vunpack.c.l.b16 %v84
    %v498 = vunpack.c.h.b16 %v84
    %v499 = vunpack.c.l.b16 %v85
    %v500 = vunpack.c.h.b16 %v85
    %v501 = vunpack.c.l.b16 %v86
    %v502 = vunpack.c.h.b16 %v86
    %v503 = vunpack.c.l.b16 %v87
    %v504 = vunpack.c.h.b16 %v87
    %v505 = vunpack.c.l.b16 %v88
    %v506 = vunpack.c.h.b16 %v88
    %v507 = vunpack.c.l.b16 %v89
    %v508 = vunpack.c.h.b16 %v89
    %v509 = vunpack.c.l.b16 %v90
    %v510 = vunpack.c.h.b16 %v90
    %v511 = vunpack.c.l.b16 %v91
    %v512 = vunpack.c.h.b16 %v91
    %v513 = vunpack.c.l.b16 %v92
    %v514 = vunpack.c.h.b16 %v92
    %v515 = vunpack.c.l.b16 %v93
    %v516 = vunpack.c.h.b16 %v93
    %v517 = vunpack.c.l.b16 %v94
    %v518 = vunpack.c.h.b16 %v94
    %v519 = vunpack.c.l.b16 %v95
    %v520 = vunpack.c.h.b16 %v95
    %v521 = vunpack.c.l.b16 %v96
    %v522 = vunpack.c.h.b16 %v96
    %v523 = vunpack.c.l.b16 %v97
    %v524 = vunpack.c.h.b16 %v97
    %v525 = vunpack.c.l.b16 %v98
    %v526 = vunpack.c.h.b16 %v98
    %v527 = vunpack.c.l.b16 %v99
    %v528 = vunpack.c.h.b16 %v99
    %v529 = vunpack.c.l.b16 %v100
    %v530 = vunpack.c.h.b16 %v100
    %v531 = vunpack.c.l.b16 %v101
    %v532 = vunpack.c.h.b16 %v101
    %v533 = vunpack.c.l.b16 %v102
    %v534 = vunpack.c.h.b16 %v102
    %v535 = vunpack.c.l.b16 %v103
    %v536 = vunpack.c.h.b16 %v103
    %v537 = vunpack.c.l.b16 %v104
    %v538 = vunpack.c.h.b16 %v104
    %v539 = vunpack.c.l.b16 %v105
    %v540 = vunpack.c.h.b16 %v105
    %v541 = vunpack.c.l.b16 %v106
    %v542 = vunpack.c.h.b16 %v106
    %v543 = vunpack.c.l.b16 %v107
    %v544 = vunpack.c.h.b16 %v107
    %v545 = vunpack.c.l.b16 %v108
    %v546 = vunpack.c.h.b16 %v108
    %v547 = vunpack.c.l.b16 %v109
    %v548 = vunpack.c.h.b16 %v109
    %v549 = vunpack.c.l.b16 %v110
    %v550 = vunpack.c.h.b16 %v110
    %v551 = vunpack.c.l.b16 %v111
    %v552 = vunpack.c.h.b16 %v111
    %v553 = vunpack.c.l.b16 %v112
    %v554 = vunpack.c.h.b16 %v112
    %v555 = vunpack.c.l.b16 %v113
    %v556 = vunpack.c.h.b16 %v113
    %v557 = vunpack.c.l.b16 %v114
    %v558 = vunpack.c.h.b16 %v114
    %v559 = vunpack.c.l.b16 %v115
    %v560 = vunpack.c.h.b16 %v115
    %v561 = vunpack.c.l.b16 %v116
    %v562 = vunpack.c.h.b16 %v116
    %v563 = vunpack.c.l.b16 %v117
    %v564 = vunpack.c.h.b16 %v117
    %v565 = vunpack.c.l.b16 %v118
    %v566 = vunpack.c.h.b16 %v118
    %v567 = vunpack.c.l.b16 %v119
    %v568 = vunpack.c.h.b16 %v119
    %v569 = vunpack.c.l.b16 %v120
    %v570 = vunpack.c.h.b16 %v120
    %v571 = vunpack.c.l.b16 %v121
    %v572 = vunpack.c.h.b16 %v121
    %v573 = vunpack.c.l.b16 %v122
    %v574 = vunpack.c.h.b16 %v122
    %v575 = vunpack.c.l.b16 %v123
    %v576 = vunpack.c.h.b16 %v123
    %v577 = vunpack.c.l.b16 %v124
    %v578 = vunpack.c.h.b16 %v124
    %v579 = vunpack.c.l.b16 %v125
    %v580 = vunpack.c.h.b16 %v125
    %v581 = vunpack.c.l.b16 %v126
    %v582 = vunpack.c.h.b16 %v126
    %v583 = vunpack.c.l.b16 %v127
    %v584 = vunpack.c.h.b16 %v127
    %v585 = vunpack.c.l.b16 %v128
    %v586 = vunpack.c.h.b16 %v128
    %v587 = vunpack.c.l.b16 %v129
    %v588 = vunpack.c.h.b16 %v129
    %v589 = vunpack.c.l.b16 %v130
    %v590 = vunpack.c.h.b16 %v130
    %v591 = vunpack.c.l.b16 %v131
    %v592 = vunpack.c.h.b16 %v131
    %v593 = vunpack.c.l.b16 %v132
    %v594 = vunpack.c.h.b16 %v132
    %v595 = vunpack.c.l.b16 %v133
    %v596 = vunpack.c.h.b16 %v133
    %v597 = vunpack.c.l.b16 %v134
    %v598 = vunpack.c.h.b16 %v134
    %v599 = vunpack.c.l.b16 %v135
    %v600 = vunpack.c.h.b16 %v135
    %v601 = vunpack.c.l.b16 %v136
    %v602 = vunpack.c.h.b16 %v136
    %v603 = vunpack.c.l.b16 %v137
    %v604 = vunpack.c.h.b16 %v137
    %v605 = vunpack.c.l.b16 %v138
    %v606 = vunpack.c.h.b16 %v138
    %v607 = vunpack.c.l.b16 %v139
    %v608 = vunpack.c.h.b16 %v139
    %v609 = vunpack.c.l.b16 %v140
    %v610 = vunpack.c.h.b16 %v140
    %v611 = vunpack.c.l.b16 %v141
    %v612 = vunpack.c.h.b16 %v141
    %v613 = vunpack.c.l.b16 %v142
    %v614 = vunpack.c.h.b16 %v142
    %v615 = vunpack.c.l.b16 %v143
    %v616 = vunpack.c.h.b16 %v143
    %v617 = vunpack.c.l.b16 %v144
    %v618 = vunpack.c.h.b16 %v144
    %v619 = vunpack.c.l.b16 %v145
    %v620 = vunpack.c.h.b16 %v145
    %v621 = vunpack.c.l.b16 %v146
    %v622 = vunpack.c.h.b16 %v146
    %v623 = vunpack.c.l.b16 %v147
    %v624 = vunpack.c.h.b16 %v147
    %v625 = vunpack.c.l.b16 %v148
    %v626 = vunpack.c.h.b16 %v148
    %v627 = vunpack.c.l.b16 %v149
    %v628 = vunpack.c.h.b16 %v149
    %v629 = vunpack.c.l.b16 %v150
    %v630 = vunpack.c.h.b16 %v150
    %v631 = vunpack.c.l.b16 %v151
    %v632 = vunpack.c.h.b16 %v151
    %v633 = vunpack.c.l.b16 %v152
    %v634 = vunpack.c.h.b16 %v152
    %v635 = vunpack.c.l.b16 %v153
    %v636 = vunpack.c.h.b16 %v153
    %v637 = vunpack.c.l.b16 %v154
    %v638 = vunpack.c.h.b16 %v154
    %v639 = vunpack.c.l.b16 %v155
    %v640 = vunpack.c.h.b16 %v155
    %v641 = vunpack.c.l.b16 %v156
    %v642 = vunpack.c.h.b16 %v156
    %v643 = vunpack.c.l.b16 %v157
    %v644 = vunpack.c.h.b16 %v157
    %v645 = vunpack.c.l.b16 %v158
    %v646 = vunpack.c.h.b16 %v158
    %v647 = vunpack.c.l.b16 %v159
    %v648 = vunpack.c.h.b16 %v159
    %v649 = vunpack.c.l.b16 %v160
    %v650 = vunpack.c.h.b16 %v160
    %v651 = vunpack.c.l.b16 %v161
    %v652 = vunpack.c.h.b16 %v161
    %v653 = vunpack.c.l.b16 %v162
    %v654 = vunpack.c.h.b16 %v162
    %v655 = vunpack.c.l.b16 %v163
    %v656 = vunpack.c.h.b16 %v163
    %v657 = vunpack.c.l.b16 %v164
    %v658 = vunpack.c.h.b16 %v164
    %v659 = vunpack.c.l.b16 %v165
    %v660 = vunpack.c.h.b16 %v165
    %v661 = vunpack.c.l.b16 %v166
    %v662 = vunpack.c.h.b16 %v166
    %v663 = vunpack.c.l.b16 %v167
    %v664 = vunpack.c.h.b16 %v167
    %v665 = vunpack.c.l.b16 %v168
    %v666 = vunpack.c.h.b16 %v168
    %v667 = vunpack.c.l.b16 %v169
    %v668 = vunpack.c.h.b16 %v169
    %v669 = vunpack.c.l.b16 %v170
    %v670 = vunpack.c.h.b16 %v170
    %v671 = vunpack.c.l.b16 %v171
    %v672 = vunpack.c.h.b16 %v171
    %v673 = vunpack.c.l.b16 %v172
    %v674 = vunpack.c.h.b16 %v172
    %v675 = vunpack.c.l.b16 %v173
    %v676 = vunpack.c.h.b16 %v173
    %v677 = vunpack.c.l.b16 %v174
    %v678 = vunpack.c.h.b16 %v174
    %v679 = vunpack.c.l.b16 %v175
    %v680 = vunpack.c.h.b16 %v175
    %v681 = vunpack.c.l.b16 %v176
    %v682 = vunpack.c.h.b16 %v176
    %v683 = vunpack.c.l.b16 %v177
    %v684 = vunpack.c.h.b16 %v177
    %v685 = vunpack.c.l.b16 %v178
    %v686 = vunpack.c.h.b16 %v178
    %v687 = vunpack.c.l.b16 %v179
    %v688 = vunpack.c.h.b16 %v179
    %v689 = vunpack.c.l.b16 %v180
    %v690 = vunpack.c.h.b16 %v180
    %v691 = vunpack.c.l.b16 %v181
    %v692 = vunpack.c.h.b16 %v181
    %v693 = vunpack.c.l.b16 %v182
    %v694 = vunpack.c.h.b16 %v182
    %v695 = vunpack.c.l.b16 %v183
    %v696 = vunpack.c.h.b16 %v183
    %v697 = vunpack.c.l.b16 %v184
    %v698 = vunpack.c.h.b16 %v184
    %v699 = vunpack.c.l.b16 %v185
    %v700 = vunpack.c.h.b16 %v185
    %v701 = vunpack.c.l.b16 %v186
    %v702 = vunpack.c.h.b16 %v186
    %v703 = vunpack.c.l.b16 %v187
    %v704 = vunpack.c.h.b16 %v187
    %v705 = vunpack.c.l.b16 %v188
    %v706 = vunpack.c.h.b16 %v188
    %v707 = vunpack.c.l.b16 %v189
    %v708 = vunpack.c.h.b16 %v189
    %v709 = vunpack.c.l.b16 %v190
    %v710 = vunpack.c.h.b16 %v190
    %v711 = vunpack.c.l.b16 %v191
    %v712 = vunpack.c.h.b16 %v191
    %v713 = vunpack.c.l.b16 %v192
    %v714 = vunpack.c.h.b16 %v192
    %v715 = vunpack.c.l.b16 %v193
    %v716 = vunpack.c.h.b16 %v193
    %v717 = vunpack.c.l.b16 %v194
    %v718 = vunpack.c.h.b16 %v194
    %v719 = vunpack.c.l.b16 %v195
    %v720 = vunpack.c.h.b16 %v195
    %v721 = vunpack.c.l.b16 %v196
    %v722 = vunpack.c.h.b16 %v196
    %v723 = vunpack.c.l.b16 %v197
    %v724 = vunpack.c.h.b16 %v197
    %v725 = vunpack.c.l.b16 %v198
    %v726 = vunpack.c.h.b16 %v198
    %v727 = vunpack.c.l.b16 %v199
    %v728 = vunpack.c.h.b16 %v199
    %v729 = vunpack.c.l.b16 %v200
    %v730 = vunpack.c.h.b16 %v200
    %v731 = vunpack.c.l.b16 %v201
    %v732 = vunpack.c.h.b16 %v201
    %v733 = vunpack.c.l.b16 %v202
    %v734 = vunpack.c.h.b16 %v202
    %v735 = vunpack.c.l.b16 %v203
    %v736 = vunpack.c.h.b16 %v203
    %v737 = vunpack.c.l.b16 %v204
    %v738 = vunpack.c.h.b16 %v204
    %v739 = vunpack.c.l.b16 %v205
    %v740 = vunpack.c.h.b16 %v205
    %v741 = vunpack.c.l.b16 %v206
    %v742 = vunpack.c.h.b16 %v206
    %v743 = vunpack.c.l.b16 %v207
    %v744 = vunpack.c.h.b16 %v207
    %v745 = vunpack.c.l.b16 %v208
    %v746 = vunpack.c.h.b16 %v208
    %v747 = vunpack.c.l.b16 %v209
    %v748 = vunpack.c.h.b16 %v209
    %v749 = vunpack.c.l.b16 %v210
    %v750 = vunpack.c.h.b16 %v210
    %v751 = vunpack.c.l.b16 %v211
    %v752 = vunpack.c.h.b16 %v211
    %v753 = vunpack.c.l.b16 %v212
    %v754 = vunpack.c.h.b16 %v212
    %v755 = vunpack.c.l.b16 %v213
    %v756 = vunpack.c.h.b16 %v213
    %v757 = vunpack.c.l.b16 %v214
    %v758 = vunpack.c.h.b16 %v214
    %v759 = vunpack.c.l.b16 %v215
    %v760 = vunpack.c.h.b16 %v215
    %v761 = vunpack.c.l.b16 %v216
    %v762 = vunpack.c.h.b16 %v216
    %v763 = vunpack.c.l.b16 %v217
    %v764 = vunpack.c.h.b16 %v217
    %v765 = vunpack.c.l.b16 %v218
    %v766 = vunpack.c.h.b16 %v218
    %v767 = vunpack.c.l.b16 %v219
    %v768 = vunpack.c.h.b16 %v219
    %v769 = vunpack.c.l.b16 %v220
    %v770 = vunpack.c.h.b16 %v220
    %v771 = vunpack.c.l.b16 %v221
    %v772 = vunpack.c.h.b16 %v221
    %v773 = vunpack.c.l.b16 %v222
    %v774 = vunpack.c.h.b16 %v222
    %v775 = vunpack.c.l.b16 %v223
    %v776 = vunpack.c.h.b16 %v223
    %v777 = vunpack.c.l.b16 %v224
    %v778 = vunpack.c.h.b16 %v224
    %v779 = vunpack.c.l.b16 %v225
    %v780 = vunpack.c.h.b16 %v225
    %v781 = vunpack.c.l.b16 %v226
    %v782 = vunpack.c.h.b16 %v226
    %v783 = vunpack.c.l.b16 %v227
    %v784 = vunpack.c.h.b16 %v227
    %v785 = vunpack.c.l.b16 %v228
    %v786 = vunpack.c.h.b16 %v228
    %v787 = vunpack.c.l.b16 %v229
    %v788 = vunpack.c.h.b16 %v229
    %v789 = vunpack.c.l.b16 %v230
    %v790 = vunpack.c.h.b16 %v230
    %v791 = vunpack.c.l.b16 %v231
    %v792 = vunpack.c.h.b16 %v231
    %v793 = vunpack.c.l.b16 %v232
    %v794 = vunpack.c.h.b16 %v232
    %v795 = vunpack.c.l.b16 %v233
    %v796 = vunpack.c.h.b16 %v233
    %v797 = vunpack.c.l.b16 %v234
    %v798 = vunpack.c.h.b16 %v234
    %v799 = vunpack.c.l.b16 %v235
    %v800 = vunpack.c.h.b16 %v235
    %v801 = vunpack.c.l.b16 %v236
    %v802 = vunpack.c.h.b16 %v236
    %v803 = vunpack.c.l.b16 %v237
    %v804 = vunpack.c.h.b16 %v237
    %v805 = vunpack.c.l.b16 %v238
    %v806 = vunpack.c.h.b16 %v238
    %v807 = vunpack.c.l.b16 %v239
    %v808 = vunpack.c.h.b16 %v239
    %v809 = vunpack.c.l.b16 %v240
    %v810 = vunpack.c.h.b16 %v240
    %v811 = vunpack.c.l.b16 %v241
    %v812 = vunpack.c.h.b16 %v241
    %v813 = vunpack.c.l.b16 %v242
    %v814 = vunpack.c.h.b16 %v242
    %v815 = vunpack.c.l.b16 %v243
    %v816 = vunpack.c.h.b16 %v243
    %v817 = vunpack.c.l.b16 %v244
    %v818 = vunpack.c.h.b16 %v244
    %v819 = vunpack.c.l.b16 %v245
    %v820 = vunpack.c.h.b16 %v245
    %v821 = vunpack.c.l.b16 %v246
    %v822 = vunpack.c.h.b16 %v246
    %v823 = vunpack.c.l.b16 %v247
    %v824 = vunpack.c.h.b16 %v247
    %v825 = vunpack.c.l.b16 %v248
    %v826 = vunpack.c.h.b16 %v248
    %v827 = vunpack.c.l.b16 %v249
    %v828 = vunpack.c.h.b16 %v249
    %v829 = vunpack.c.l.b16 %v250
    %v830 = vunpack.c.h.b16 %v250
    %v831 = vunpack.c.l.b16 %v251
    %v832 = vunpack.c.h.b16 %v251
    %v833 = vunpack.c.l.b16 %v252
    %v834 = vunpack.c.h.b16 %v252
    %v835 = vunpack.c.l.b16 %v253
    %v836 = vunpack.c.h.b16 %v253
    %v837 = vunpack.c.l.b16 %v254
    %v838 = vunpack.c.h.b16 %v254
    %v839 = vunpack.c.l.b16 %v255
    %v840 = vunpack.c.h.b16 %v255
    %v841 = vunpack.c.l.b16 %v256
    %v842 = vunpack.c.h.b16 %v256
    %v843 = vunpack.c.l.b16 %v257
    %v844 = vunpack.c.h.b16 %v257
    %v845 = vunpack.c.l.b16 %v258
    %v846 = vunpack.c.h.b16 %v258
    %v847 = vunpack.c.l.b16 %v259
    %v848 = vunpack.c.h.b16 %v259
    %v849 = vunpack.c.l.b16 %v260
    %v850 = vunpack.c.h.b16 %v260
    %v851 = vunpack.c.l.b16 %v261
    %v852 = vunpack.c.h.b16 %v261
    %v853 = vunpack.c.l.b16 %v262
    %v854 = vunpack.c.h.b16 %v262
    %v855 = vunpack.c.l.b16 %v263
    %v856 = vunpack.c.h.b16 %v263
    %v857 = vunpack.c.l.b16 %v264
    %v858 = vunpack.c.h.b16 %v264
    %v859 = vunpack.c.l.b16 %v265
    %v860 = vunpack.c.h.b16 %v265
    %v861 = vunpack.c.l.b16 %v266
    %v862 = vunpack.c.h.b16 %v266
    %v863 = vunpack.c.l.b16 %v267
    %v864 = vunpack.c.h.b16 %v267
    %v865 = vunpack.c.l.b16 %v268
    %v866 = vunpack.c.h.b16 %v268
    %v867 = vpack.c.b16 %v479, %v475
    %v868 = vpack.c.b16 %v480, %v476
    %v869 = vpack.c.b16 %v481, %v477
    %v870 = vpack.c.b16 %v482, %v478
    %v871 = vpack.c.b16 %v487, %v483
    %v872 = vpack.c.b16 %v488, %v484
    %v873 = vpack.c.b16 %v489, %v485
    %v874 = vpack.c.b16 %v490, %v486
    %v875 = vpack.c.b16 %v495, %v491
    %v876 = vpack.c.b16 %v496, %v492
    %v877 = vpack.c.b16 %v497, %v493
    %v878 = vpack.c.b16 %v498, %v494
    %v879 = vpack.c.b16 %v503, %v499
    %v880 = vpack.c.b16 %v504, %v500
    %v881 = vpack.c.b16 %v505, %v501
    %v882 = vpack.c.b16 %v506, %v502
    %v883 = vpack.c.b16 %v511, %v507
    %v884 = vpack.c.b16 %v512, %v508
    %v885 = vpack.c.b16 %v513, %v509
    %v886 = vpack.c.b16 %v514, %v510
    %v887 = vpack.c.b16 %v519, %v515
    %v888 = vpack.c.b16 %v520, %v516
    %v889 = vpack.c.b16 %v521, %v517
    %v890 = vpack.c.b16 %v522, %v518
    %v891 = vpack.c.b16 %v527, %v523
    %v892 = vpack.c.b16 %v528, %v524
    %v893 = vpack.c.b16 %v529, %v525
    %v894 = vpack.c.b16 %v530, %v526
    %v895 = vpack.c.b16 %v535, %v531
    %v896 = vpack.c.b16 %v536, %v532
    %v897 = vpack.c.b16 %v537, %v533
    %v898 = vpack.c.b16 %v538, %v534
    %v899 = vpack.c.b16 %v543, %v539
    %v900 = vpack.c.b16 %v544, %v540
    %v901 = vpack.c.b16 %v545, %v541
    %v902 = vpack.c.b16 %v546, %v542
    %v903 = vpack.c.b16 %v551, %v547
    %v904 = vpack.c.b16 %v552, %v548
    %v905 = vpack.c.b16 %v553, %v549
    %v906 = vpack.c.b16 %v554, %v550
    %v907 = vpack.c.b16 %v559, %v555
    %v908 = vpack.c.b16 %v560, %v556
    %v909 = vpack.c.b16 %v561, %v557
    %v910 = vpack.c.b16 %v562, %v558
    %v911 = vpack.c.b16 %v567, %v563
    %v912 = vpack.c.b16 %v568, %v564
    %v913 = vpack.c.b16 %v569, %v565
    %v914 = vpack.c.b16 %v570, %v566
    %v915 = vpack.c.b16 %v575, %v571
    %v916 = vpack.c.b16 %v576, %v572
    %v917 = vpack.c.b16 %v577, %v573
    %v918 = vpack.c.b16 %v578, %v574
    %v919 = vpack.c.b16 %v583, %v579
    %v920 = vpack.c.b16 %v584, %v580
    %v921 = vpack.c.b16 %v585, %v581
    %v922 = vpack.c.b16 %v586, %v582
    %v923 = vpack.c.b16 %v591, %v587
    %v924 = vpack.c.b16 %v592, %v588
    %v925 = vpack.c.b16 %v593, %v589
    %v926 = vpack.c.b16 %v594, %v590
    %v927 = vpack.c.b16 %v599, %v595
    %v928 = vpack.c.b16 %v600, %v596
    %v929 = vpack.c.b16 %v601, %v597
    %v930 = vpack.c.b16 %v602, %v598
    %v931 = vpack.c.b16 %v607, %v603
    %v932 = vpack.c.b16 %v608, %v604
    %v933 = vpack.c.b16 %v609, %v605
    %v934 = vpack.c.b16 %v610, %v606
    %v935 = vpack.c.b16 %v615, %v611
    %v936 = vpack.c.b16 %v616, %v612
    %v937 = vpack.c.b16 %v617, %v613
    %v938 = vpack.c.b16 %v618, %v614
    %v939 = vpack.c.b16 %v623, %v619
    %v940 = vpack.c.b16 %v624, %v620
    %v941 = vpack.c.b16 %v625, %v621
    %v942 = vpack.c.b16 %v626, %v622
    %v943 = vpack.c.b16 %v631, %v627
    %v944 = vpack.c.b16 %v632, %v628
    %v945 = vpack.c.b16 %v633, %v629
    %v946 = vpack.c.b16 %v634, %v630
    %v947 = vpack.c.b16 %v639, %v635
    %v948 = vpack.c.b16 %v640, %v636
    %v949 = vpack.c.b16 %v641, %v637
    %v950 = vpack.c.b16 %v642, %v638
    %v951 = vpack.c.b16 %v647, %v643
    %v952 = vpack.c.b16 %v648, %v644
    %v953 = vpack.c.b16 %v649, %v645
    %v954 = vpack.c.b16 %v650, %v646
    %v955 = vpack.c.b16 %v655, %v651
    %v956 = vpack.c.b16 %v656, %v652
    %v957 = vpack.c.b16 %v657, %v653
    %v958 = vpack.c.b16 %v658, %v654
    %v959 = vpack.c.b16 %v663, %v659
    %v960 = vpack.c.b16 %v664, %v660
    %v961 = vpack.c.b16 %v665, %v661
    %v962 = vpack.c.b16 %v666, %v662
    %v963 = vpack.c.b16 %v671, %v667
    %v964 = vpack.c.b16 %v672, %v668
    %v965 = vpack.c.b16 %v673, %v669
    %v966 = vpack.c.b16 %v674, %v670
    %v967 = vpack.c.b16 %v679, %v675
    %v968 = vpack.c.b16 %v680, %v676
    %v969 = vpack.c.b16 %v681, %v677
    %v970 = vpack.c.b16 %v682, %v678
    %v971 = vpack.c.b16 %v687, %v683
    %v972 = vpack.c.b16 %v688, %v684
    %v973 = vpack.c.b16 %v689, %v685
    %v974 = vpack.c.b16 %v690, %v686
    %v975 = vpack.c.b16 %v695, %v691
    %v976 = vpack.c.b16 %v696, %v692
    %v977 = vpack.c.b16 %v697, %v693
    %v978 = vpack.c.b16 %v698, %v694
    %v979 = vpack.c.b16 %v703, %v699
    %v980 = vpack.c.b16 %v704, %v700
    %v981 = vpack.c.b16 %v705, %v701
    %v982 = vpack.c.b16 %v706, %v702
    %v983 = vpack.c.b16 %v711, %v707
    %v984 = vpack.c.b16 %v712, %v708
    %v985 = vpack.c.b16 %v713, %v709
    %v986 = vpack.c.b16 %v714, %v710
    %v987 = vpack.c.b16 %v719, %v715
    %v988 = vpack.c.b16 %v720, %v716
    %v989 = vpack.c.b16 %v721, %v717
    %v990 = vpack.c.b16 %v722, %v718
    %v991 = vpack.c.b16 %v727, %v723
    %v992 = vpack.c.b16 %v728, %v724
    %v993 = vpack.c.b16 %v729, %v725
    %v994 = vpack.c.b16 %v730, %v726
    %v995 = vpack.c.b16 %v735, %v731
    %v996 = vpack.c.b16 %v736, %v732
    %v997 = vpack.c.b16 %v737, %v733
    %v998 = vpack.c.b16 %v738, %v734
    %v999 = vpack.c.b16 %v743, %v739
    %v1000 = vpack.c.b16 %v744, %v740
    %v1001 = vpack.c.b16 %v745, %v741
    %v1002 = vpack.c.b16 %v746, %v742
    %v1003 = vpack.c.b16 %v751, %v747
    %v1004 = vpack.c.b16 %v752, %v748
    %v1005 = vpack.c.b16 %v753, %v749
    %v1006 = vpack.c.b16 %v754, %v750
    %v1007 = vpack.c.b16 %v759, %v755
    %v1008 = vpack.c.b16 %v760, %v756
    %v1009 = vpack.c.b16 %v761, %v757
    %v1010 = vpack.c.b16 %v762, %v758
    %v1011 = vpack.c.b16 %v767, %v763
    %v1012 = vpack.c.b16 %v768, %v764
    %v1013 = vpack.c.b16 %v769, %v765
    %v1014 = vpack.c.b16 %v770, %v766
    %v1015 = vpack.c.b16 %v775, %v771
    %v1016 = vpack.c.b16 %v776, %v772
    %v1017 = vpack.c.b16 %v777, %v773
    %v1018 = vpack.c.b16 %v778, %v774
    %v1019 = vpack.c.b16 %v783, %v779
    %v1020 = vpack.c.b16 %v784, %v780
    %v1021 = vpack.c.b16 %v785, %v781
    %v1022 = vpack.c.b16 %v786, %v782
    %v1023 = vpack.c.b16 %v791, %v787
    %v1024 = vpack.c.b16 %v792, %v788
    %v1025 = vpack.c.b16 %v793, %v789
    %v1026 = vpack.c.b16 %v794, %v790
    %v1027 = vpack.c.b16 %v799, %v795
    %v1028 = vpack.c.b16 %v800, %v796
    %v1029 = vpack.c.b16 %v801, %v797
    %v1030 = vpack.c.b16 %v802, %v798
    %v1031 = vpack.c.b16 %v807, %v803
    %v1032 = vpack.c.b16 %v808, %v804
    %v1033 = vpack.c.b16 %v809, %v805
    %v1034 = vpack.c.b16 %v810, %v806
    %v1035 = vpack.c.b16 %v815, %v811
    %v1036 = vpack.c.b16 %v816, %v812
    %v1037 = vpack.c.b16 %v817, %v813
    %v1038 = vpack.c.b16 %v818, %v814
    %v1039 = vpack.c.b16 %v823, %v819
    %v1040 = vpack.c.b16 %v824, %v820
    %v1041 = vpack.c.b16 %v825, %v821
    %v1042 = vpack.c.b16 %v826, %v822
    %v1043 = vpack.c.b16 %v831, %v827
    %v1044 = vpack.c.b16 %v832, %v828
    %v1045 = vpack.c.b16 %v833, %v829
    %v1046 = vpack.c.b16 %v834, %v830
    %v1047 = vpack.c.b16 %v839, %v835
    %v1048 = vpack.c.b16 %v840, %v836
    %v1049 = vpack.c.b16 %v841, %v837
    %v1050 = vpack.c.b16 %v842, %v838
    %v1051 = vpack.c.b16 %v847, %v843
    %v1052 = vpack.c.b16 %v848, %v844
    %v1053 = vpack.c.b16 %v849, %v845
    %v1054 = vpack.c.b16 %v850, %v846
    %v1055 = vpack.c.b16 %v855, %v851
    %v1056 = vpack.c.b16 %v856, %v852
    %v1057 = vpack.c.b16 %v857, %v853
    %v1058 = vpack.c.b16 %v858, %v854
    %v1059 = vpack.c.b16 %v863, %v859
    %v1060 = vpack.c.b16 %v864, %v860
    %v1061 = vpack.c.b16 %v865, %v861
    %v1062 = vpack.c.b16 %v866, %v862
    %vm1259 = vcmask 130048
    %v1261 = vsel %vm1259, %v72, 0
    %1263 = vmatpush.bf16.msra.mxu0 %v895
    %1264 = vmatpush.bf16.msra.mxu0 %v891
    %1265 = vmatpush.bf16.msra.mxu0 %v887
    %1266 = vmatpush.bf16.msra.mxu0 %v883
    %1267 = vmatpush.bf16.msra.mxu0 %v879
    %1268 = vmatpush.bf16.msra.mxu0 %v875
    %1269 = vmatpush.bf16.msra.mxu0 %v871
    %1270 = vmatpush.bf16.msra.mxu0 %v867
    %1271 = vmatmul.bf16.gmra.mxu0 %v66
    %v1272 = vpop.f32.mrf.mxu0
    %v1273 = vadd.f32 %v271, %v1272
    %v1274 = vpop.f32.mrf.mxu0
    %1275 = vdwg.mxu0
    %1276 = vmatpush.bf16.msra.mxu0 %v927
    %1277 = vmatpush.bf16.msra.mxu0 %v923
    %1278 = vmatpush.bf16.msra.mxu0 %v919
    %1279 = vmatpush.bf16.msra.mxu0 %v915
    %1280 = vmatpush.bf16.msra.mxu0 %v911
    %1281 = vmatpush.bf16.msra.mxu0 %v907
    %1282 = vmatpush.bf16.msra.mxu0 %v903
    %1283 = vmatpush.bf16.msra.mxu0 %v899
    %1284 = vmatmul.bf16.gmra.mxu0 %v67
    %v1285 = vpop.f32.mrf.mxu0
    %v1286 = vadd.f32 %v1273, %v1285
    %v1287 = vpop.f32.mrf.mxu0
    %1288 = vdwg.mxu0
    %1289 = vmatpush.bf16.msra.mxu0 %v959
    %1290 = vmatpush.bf16.msra.mxu0 %v955
    %1291 = vmatpush.bf16.msra.mxu0 %v951
    %1292 = vmatpush.bf16.msra.mxu0 %v947
    %1293 = vmatpush.bf16.msra.mxu0 %v943
    %1294 = vmatpush.bf16.msra.mxu0 %v939
    %1295 = vmatpush.bf16.msra.mxu0 %v935
    %1296 = vmatpush.bf16.msra.mxu0 %v931
    %1297 = vmatmul.bf16.gmra.mxu0 %v68
    %v1298 = vpop.f32.mrf.mxu0
    %v1299 = vadd.f32 %v1286, %v1298
    %v1300 = vpop.f32.mrf.mxu0
    %1301 = vdwg.mxu0
    %1302 = vmatpush.bf16.msra.mxu0 %v991
    %1303 = vmatpush.bf16.msra.mxu0 %v987
    %1304 = vmatpush.bf16.msra.mxu0 %v983
    %1305 = vmatpush.bf16.msra.mxu0 %v979
    %1306 = vmatpush.bf16.msra.mxu0 %v975
    %1307 = vmatpush.bf16.msra.mxu0 %v971
    %1308 = vmatpush.bf16.msra.mxu0 %v967
    %1309 = vmatpush.bf16.msra.mxu0 %v963
    %1310 = vmatmul.bf16.gmra.mxu0 %v69
    %v1311 = vpop.f32.mrf.mxu0
    %v1312 = vadd.f32 %v1299, %v1311
    %v1313 = vpop.f32.mrf.mxu0
    %1314 = vdwg.mxu0
    %1315 = vmatpush.bf16.msra.mxu0 %v1023
    %1316 = vmatpush.bf16.msra.mxu0 %v1019
    %1317 = vmatpush.bf16.msra.mxu0 %v1015
    %1318 = vmatpush.bf16.msra.mxu0 %v1011
    %1319 = vmatpush.bf16.msra.mxu0 %v1007
    %1320 = vmatpush.bf16.msra.mxu0 %v1003
    %1321 = vmatpush.bf16.msra.mxu0 %v999
    %1322 = vmatpush.bf16.msra.mxu0 %v995
    %1323 = vmatmul.bf16.gmra.mxu0 %v70
    %v1324 = vpop.f32.mrf.mxu0
    %v1325 = vadd.f32 %v1312, %v1324
    %v1326 = vpop.f32.mrf.mxu0
    %1327 = vdwg.mxu0
    %1328 = vmatpush.bf16.msra.mxu0 %v1055
    %1329 = vmatpush.bf16.msra.mxu0 %v1051
    %1330 = vmatpush.bf16.msra.mxu0 %v1047
    %1331 = vmatpush.bf16.msra.mxu0 %v1043
    %1332 = vmatpush.bf16.msra.mxu0 %v1039
    %1333 = vmatpush.bf16.msra.mxu0 %v1035
    %1334 = vmatpush.bf16.msra.mxu0 %v1031
    %1335 = vmatpush.bf16.msra.mxu0 %v1027
    %1336 = vmatmul.bf16.gmra.mxu0 %v71
    %v1337 = vpop.f32.mrf.mxu0
    %v1338 = vadd.f32 %v1325, %v1337
    %v1339 = vpop.f32.mrf.mxu0
    %1340 = vdwg.mxu0
    %1341 = vmatpush.bf16.msra.mxu0 0
    %1342 = vmatpush.bf16.msra.mxu0 0
    %1343 = vmatpush.bf16.msra.mxu0 0
    %1344 = vmatpush.bf16.msra.mxu0 0
    %1345 = vmatpush.bf16.msra.mxu0 0
    %1346 = vmatpush.bf16.msra.mxu0 0
    %1347 = vmatpush.bf16.msra.mxu0 0
    %1348 = vmatpush.bf16.msra.mxu0 %v1059
    %1349 = vmatmul.bf16.gmra.mxu0 %v1261
    %v1350 = vpop.f32.mrf.mxu0
    %v1351 = vadd.f32 %v1338, %v1350
    %v1352 = vpop.f32.mrf.mxu0
    %1353 = vdwg.mxu0
    %1354 = vmatpush.bf16.msra.mxu0 %v896
    %1355 = vmatpush.bf16.msra.mxu0 %v892
    %1356 = vmatpush.bf16.msra.mxu0 %v888
    %1357 = vmatpush.bf16.msra.mxu0 %v884
    %1358 = vmatpush.bf16.msra.mxu0 %v880
    %1359 = vmatpush.bf16.msra.mxu0 %v876
    %1360 = vmatpush.bf16.msra.mxu0 %v872
    %1361 = vmatpush.bf16.msra.mxu0 %v868
    %1362 = vmatmul.bf16.gmra.mxu0 %v66
    %v1363 = vpop.f32.mrf.mxu0
    %v1364 = vadd.f32 %v272, %v1363
    %v1365 = vpop.f32.mrf.mxu0
    %1366 = vdwg.mxu0
    %1367 = vmatpush.bf16.msra.mxu0 %v928
    %1368 = vmatpush.bf16.msra.mxu0 %v924
    %1369 = vmatpush.bf16.msra.mxu0 %v920
    %1370 = vmatpush.bf16.msra.mxu0 %v916
    %1371 = vmatpush.bf16.msra.mxu0 %v912
    %1372 = vmatpush.bf16.msra.mxu0 %v908
    %1373 = vmatpush.bf16.msra.mxu0 %v904
    %1374 = vmatpush.bf16.msra.mxu0 %v900
    %1375 = vmatmul.bf16.gmra.mxu0 %v67
    %v1376 = vpop.f32.mrf.mxu0
    %v1377 = vadd.f32 %v1364, %v1376
    %v1378 = vpop.f32.mrf.mxu0
    %1379 = vdwg.mxu0
    %1380 = vmatpush.bf16.msra.mxu0 %v960
    %1381 = vmatpush.bf16.msra.mxu0 %v956
    %1382 = vmatpush.bf16.msra.mxu0 %v952
    %1383 = vmatpush.bf16.msra.mxu0 %v948
    %1384 = vmatpush.bf16.msra.mxu0 %v944
    %1385 = vmatpush.bf16.msra.mxu0 %v940
    %1386 = vmatpush.bf16.msra.mxu0 %v936
    %1387 = vmatpush.bf16.msra.mxu0 %v932
    %1388 = vmatmul.bf16.gmra.mxu0 %v68
    %v1389 = vpop.f32.mrf.mxu0
    %v1390 = vadd.f32 %v1377, %v1389
    %v1391 = vpop.f32.mrf.mxu0
    %1392 = vdwg.mxu0
    %1393 = vmatpush.bf16.msra.mxu0 %v992
    %1394 = vmatpush.bf16.msra.mxu0 %v988
    %1395 = vmatpush.bf16.msra.mxu0 %v984
    %1396 = vmatpush.bf16.msra.mxu0 %v980
    %1397 = vmatpush.bf16.msra.mxu0 %v976
    %1398 = vmatpush.bf16.msra.mxu0 %v972
    %1399 = vmatpush.bf16.msra.mxu0 %v968
    %1400 = vmatpush.bf16.msra.mxu0 %v964
    %1401 = vmatmul.bf16.gmra.mxu0 %v69
    %v1402 = vpop.f32.mrf.mxu0
    %v1403 = vadd.f32 %v1390, %v1402
    %v1404 = vpop.f32.mrf.mxu0
    %1405 = vdwg.mxu0
    %1406 = vmatpush.bf16.msra.mxu0 %v1024
    %1407 = vmatpush.bf16.msra.mxu0 %v1020
    %1408 = vmatpush.bf16.msra.mxu0 %v1016
    %1409 = vmatpush.bf16.msra.mxu0 %v1012
    %1410 = vmatpush.bf16.msra.mxu0 %v1008
    %1411 = vmatpush.bf16.msra.mxu0 %v1004
    %1412 = vmatpush.bf16.msra.mxu0 %v1000
    %1413 = vmatpush.bf16.msra.mxu0 %v996
    %1414 = vmatmul.bf16.gmra.mxu0 %v70
    %v1415 = vpop.f32.mrf.mxu0
    %v1416 = vadd.f32 %v1403, %v1415
    %v1417 = vpop.f32.mrf.mxu0
    %1418 = vdwg.mxu0
    %1419 = vmatpush.bf16.msra.mxu0 %v1056
    %1420 = vmatpush.bf16.msra.mxu0 %v1052
    %1421 = vmatpush.bf16.msra.mxu0 %v1048
    %1422 = vmatpush.bf16.msra.mxu0 %v1044
    %1423 = vmatpush.bf16.msra.mxu0 %v1040
    %1424 = vmatpush.bf16.msra.mxu0 %v1036
    %1425 = vmatpush.bf16.msra.mxu0 %v1032
    %1426 = vmatpush.bf16.msra.mxu0 %v1028
    %1427 = vmatmul.bf16.gmra.mxu0 %v71
    %v1428 = vpop.f32.mrf.mxu0
    %v1429 = vadd.f32 %v1416, %v1428
    %v1430 = vpop.f32.mrf.mxu0
    %1431 = vdwg.mxu0
    %1432 = vmatpush.bf16.msra.mxu0 0
    %1433 = vmatpush.bf16.msra.mxu0 0
    %1434 = vmatpush.bf16.msra.mxu0 0
    %1435 = vmatpush.bf16.msra.mxu0 0
    %1436 = vmatpush.bf16.msra.mxu0 0
    %1437 = vmatpush.bf16.msra.mxu0 0
    %1438 = vmatpush.bf16.msra.mxu0 0
    %1439 = vmatpush.bf16.msra.mxu0 %v1060
    %1440 = vmatmul.bf16.gmra.mxu0 %v1261
    %v1441 = vpop.f32.mrf.mxu0
    %v1442 = vadd.f32 %v1429, %v1441
    %v1443 = vpop.f32.mrf.mxu0
    %1444 = vdwg.mxu0
    %1445 = vmatpush.bf16.msra.mxu0 %v897
    %1446 = vmatpush.bf16.msra.mxu0 %v893
    %1447 = vmatpush.bf16.msra.mxu0 %v889
    %1448 = vmatpush.bf16.msra.mxu0 %v885
    %1449 = vmatpush.bf16.msra.mxu0 %v881
    %1450 = vmatpush.bf16.msra.mxu0 %v877
    %1451 = vmatpush.bf16.msra.mxu0 %v873
    %1452 = vmatpush.bf16.msra.mxu0 %v869
    %1453 = vmatmul.bf16.gmra.mxu0 %v66
    %v1454 = vpop.f32.mrf.mxu0
    %v1455 = vadd.f32 %v273, %v1454
    %v1456 = vpop.f32.mrf.mxu0
    %1457 = vdwg.mxu0
    %1458 = vmatpush.bf16.msra.mxu0 %v929
    %1459 = vmatpush.bf16.msra.mxu0 %v925
    %1460 = vmatpush.bf16.msra.mxu0 %v921
    %1461 = vmatpush.bf16.msra.mxu0 %v917
    %1462 = vmatpush.bf16.msra.mxu0 %v913
    %1463 = vmatpush.bf16.msra.mxu0 %v909
    %1464 = vmatpush.bf16.msra.mxu0 %v905
    %1465 = vmatpush.bf16.msra.mxu0 %v901
    %1466 = vmatmul.bf16.gmra.mxu0 %v67
    %v1467 = vpop.f32.mrf.mxu0
    %v1468 = vadd.f32 %v1455, %v1467
    %v1469 = vpop.f32.mrf.mxu0
    %1470 = vdwg.mxu0
    %1471 = vmatpush.bf16.msra.mxu0 %v961
    %1472 = vmatpush.bf16.msra.mxu0 %v957
    %1473 = vmatpush.bf16.msra.mxu0 %v953
    %1474 = vmatpush.bf16.msra.mxu0 %v949
    %1475 = vmatpush.bf16.msra.mxu0 %v945
    %1476 = vmatpush.bf16.msra.mxu0 %v941
    %1477 = vmatpush.bf16.msra.mxu0 %v937
    %1478 = vmatpush.bf16.msra.mxu0 %v933
    %1479 = vmatmul.bf16.gmra.mxu0 %v68
    %v1480 = vpop.f32.mrf.mxu0
    %v1481 = vadd.f32 %v1468, %v1480
    %v1482 = vpop.f32.mrf.mxu0
    %1483 = vdwg.mxu0
    %1484 = vmatpush.bf16.msra.mxu0 %v993
    %1485 = vmatpush.bf16.msra.mxu0 %v989
    %1486 = vmatpush.bf16.msra.mxu0 %v985
    %1487 = vmatpush.bf16.msra.mxu0 %v981
    %1488 = vmatpush.bf16.msra.mxu0 %v977
    %1489 = vmatpush.bf16.msra.mxu0 %v973
    %1490 = vmatpush.bf16.msra.mxu0 %v969
    %1491 = vmatpush.bf16.msra.mxu0 %v965
    %1492 = vmatmul.bf16.gmra.mxu0 %v69
    %v1493 = vpop.f32.mrf.mxu0
    %v1494 = vadd.f32 %v1481, %v1493
    %v1495 = vpop.f32.mrf.mxu0
    %1496 = vdwg.mxu0
    %1497 = vmatpush.bf16.msra.mxu0 %v1025
    %1498 = vmatpush.bf16.msra.mxu0 %v1021
    %1499 = vmatpush.bf16.msra.mxu0 %v1017
    %1500 = vmatpush.bf16.msra.mxu0 %v1013
    %1501 = vmatpush.bf16.msra.mxu0 %v1009
    %1502 = vmatpush.bf16.msra.mxu0 %v1005
    %1503 = vmatpush.bf16.msra.mxu0 %v1001
    %1504 = vmatpush.bf16.msra.mxu0 %v997
    %1505 = vmatmul.bf16.gmra.mxu0 %v70
    %v1506 = vpop.f32.mrf.mxu0
    %v1507 = vadd.f32 %v1494, %v1506
    %v1508 = vpop.f32.mrf.mxu0
    %1509 = vdwg.mxu0
    %1510 = vmatpush.bf16.msra.mxu0 %v1057
    %1511 = vmatpush.bf16.msra.mxu0 %v1053
    %1512 = vmatpush.bf16.msra.mxu0 %v1049
    %1513 = vmatpush.bf16.msra.mxu0 %v1045
    %1514 = vmatpush.bf16.msra.mxu0 %v1041
    %1515 = vmatpush.bf16.msra.mxu0 %v1037
    %1516 = vmatpush.bf16.msra.mxu0 %v1033
    %1517 = vmatpush.bf16.msra.mxu0 %v1029
    %1518 = vmatmul.bf16.gmra.mxu0 %v71
    %v1519 = vpop.f32.mrf.mxu0
    %v1520 = vadd.f32 %v1507, %v1519
    %v1521 = vpop.f32.mrf.mxu0
    %1522 = vdwg.mxu0
    %1523 = vmatpush.bf16.msra.mxu0 0
    %1524 = vmatpush.bf16.msra.mxu0 0
    %1525 = vmatpush.bf16.msra.mxu0 0
    %1526 = vmatpush.bf16.msra.mxu0 0
    %1527 = vmatpush.bf16.msra.mxu0 0
    %1528 = vmatpush.bf16.msra.mxu0 0
    %1529 = vmatpush.bf16.msra.mxu0 0
    %1530 = vmatpush.bf16.msra.mxu0 %v1061
    %1531 = vmatmul.bf16.gmra.mxu0 %v1261
    %v1532 = vpop.f32.mrf.mxu0
    %v1533 = vadd.f32 %v1520, %v1532
    %v1534 = vpop.f32.mrf.mxu0
    %1535 = vdwg.mxu0
    %1536 = vmatpush.bf16.msra.mxu0 %v898
    %1537 = vmatpush.bf16.msra.mxu0 %v894
    %1538 = vmatpush.bf16.msra.mxu0 %v890
    %1539 = vmatpush.bf16.msra.mxu0 %v886
    %1540 = vmatpush.bf16.msra.mxu0 %v882
    %1541 = vmatpush.bf16.msra.mxu0 %v878
    %1542 = vmatpush.bf16.msra.mxu0 %v874
    %1543 = vmatpush.bf16.msra.mxu0 %v870
    %1544 = vmatmul.bf16.gmra.mxu0 %v66
    %v1545 = vpop.f32.mrf.mxu0
    %v1546 = vadd.f32 %v274, %v1545
    %v1547 = vpop.f32.mrf.mxu0
    %1548 = vdwg.mxu0
    %1549 = vmatpush.bf16.msra.mxu0 %v930
    %1550 = vmatpush.bf16.msra.mxu0 %v926
    %1551 = vmatpush.bf16.msra.mxu0 %v922
    %1552 = vmatpush.bf16.msra.mxu0 %v918
    %1553 = vmatpush.bf16.msra.mxu0 %v914
    %1554 = vmatpush.bf16.msra.mxu0 %v910
    %1555 = vmatpush.bf16.msra.mxu0 %v906
    %1556 = vmatpush.bf16.msra.mxu0 %v902
    %1557 = vmatmul.bf16.gmra.mxu0 %v67
    %v1558 = vpop.f32.mrf.mxu0
    %v1559 = vadd.f32 %v1546, %v1558
    %v1560 = vpop.f32.mrf.mxu0
    %1561 = vdwg.mxu0
    %1562 = vmatpush.bf16.msra.mxu0 %v962
    %1563 = vmatpush.bf16.msra.mxu0 %v958
    %1564 = vmatpush.bf16.msra.mxu0 %v954
    %1565 = vmatpush.bf16.msra.mxu0 %v950
    %1566 = vmatpush.bf16.msra.mxu0 %v946
    %1567 = vmatpush.bf16.msra.mxu0 %v942
    %1568 = vmatpush.bf16.msra.mxu0 %v938
    %1569 = vmatpush.bf16.msra.mxu0 %v934
    %1570 = vmatmul.bf16.gmra.mxu0 %v68
    %v1571 = vpop.f32.mrf.mxu0
    %v1572 = vadd.f32 %v1559, %v1571
    %v1573 = vpop.f32.mrf.mxu0
    %1574 = vdwg.mxu0
    %1575 = vmatpush.bf16.msra.mxu0 %v994
    %1576 = vmatpush.bf16.msra.mxu0 %v990
    %1577 = vmatpush.bf16.msra.mxu0 %v986
    %1578 = vmatpush.bf16.msra.mxu0 %v982
    %1579 = vmatpush.bf16.msra.mxu0 %v978
    %1580 = vmatpush.bf16.msra.mxu0 %v974
    %1581 = vmatpush.bf16.msra.mxu0 %v970
    %1582 = vmatpush.bf16.msra.mxu0 %v966
    %1583 = vmatmul.bf16.gmra.mxu0 %v69
    %v1584 = vpop.f32.mrf.mxu0
    %v1585 = vadd.f32 %v1572, %v1584
    %v1586 = vpop.f32.mrf.mxu0
    %1587 = vdwg.mxu0
    %1588 = vmatpush.bf16.msra.mxu0 %v1026
    %1589 = vmatpush.bf16.msra.mxu0 %v1022
    %1590 = vmatpush.bf16.msra.mxu0 %v1018
    %1591 = vmatpush.bf16.msra.mxu0 %v1014
    %1592 = vmatpush.bf16.msra.mxu0 %v1010
    %1593 = vmatpush.bf16.msra.mxu0 %v1006
    %1594 = vmatpush.bf16.msra.mxu0 %v1002
    %1595 = vmatpush.bf16.msra.mxu0 %v998
    %1596 = vmatmul.bf16.gmra.mxu0 %v70
    %v1597 = vpop.f32.mrf.mxu0
    %v1598 = vadd.f32 %v1585, %v1597
    %v1599 = vpop.f32.mrf.mxu0
    %1600 = vdwg.mxu0
    %1601 = vmatpush.bf16.msra.mxu0 %v1058
    %1602 = vmatpush.bf16.msra.mxu0 %v1054
    %1603 = vmatpush.bf16.msra.mxu0 %v1050
    %1604 = vmatpush.bf16.msra.mxu0 %v1046
    %1605 = vmatpush.bf16.msra.mxu0 %v1042
    %1606 = vmatpush.bf16.msra.mxu0 %v1038
    %1607 = vmatpush.bf16.msra.mxu0 %v1034
    %1608 = vmatpush.bf16.msra.mxu0 %v1030
    %1609 = vmatmul.bf16.gmra.mxu0 %v71
    %v1610 = vpop.f32.mrf.mxu0
    %v1611 = vadd.f32 %v1598, %v1610
    %v1612 = vpop.f32.mrf.mxu0
    %1613 = vdwg.mxu0
    %1614 = vmatpush.bf16.msra.mxu0 0
    %1615 = vmatpush.bf16.msra.mxu0 0
    %1616 = vmatpush.bf16.msra.mxu0 0
    %1617 = vmatpush.bf16.msra.mxu0 0
    %1618 = vmatpush.bf16.msra.mxu0 0
    %1619 = vmatpush.bf16.msra.mxu0 0
    %1620 = vmatpush.bf16.msra.mxu0 0
    %1621 = vmatpush.bf16.msra.mxu0 %v1062
    %1622 = vmatmul.bf16.gmra.mxu0 %v1261
    %v1623 = vpop.f32.mrf.mxu0
    %v1624 = vadd.f32 %v1611, %v1623
    %v1625 = vpop.f32.mrf.mxu0
    %1626 = vdwg.mxu0
    %v1627 = vmax.f32 %v1351, 0.0
    %v1628 = vmax.f32 %v1442, 0.0
    %v1629 = vmax.f32 %v1533, 0.0
    %v1630 = vmax.f32 %v1624, 0.0
    %v1631 = vpack.c.bf16 %v1627, %v1627
    %v1632 = vpack.c.bf16 %v1628, %v1628
    %v1633 = vpack.c.bf16 %v1629, %v1629
    %v1634 = vpack.c.bf16 %v1630, %v1630
    %v1635 = vld [vmem:[#allocation4] sm:$0xff]
    %v1636 = vld [vmem:[#allocation4 + $0x8] sm:$0xff]
    %v1637 = vld [vmem:[#allocation4 + $0x10] sm:$0xff]
    %v1638 = vld [vmem:[#allocation4 + $0x18] sm:$0xff]
    %v1639 = vld [vmem:[#allocation4 + $0x20] sm:$0xff]
    %v1640 = vld [vmem:[#allocation4 + $0x28] sm:$0xff]
    %v1641 = vld [vmem:[#allocation4 + $0x30] sm:$0xff]
    %v1642 = vld [vmem:[#allocation4 + $0x38] sm:$0xff]
    %v1643 = vld [vmem:[#allocation4 + $0x40] sm:$0xff]
    %v1644 = vld [vmem:[#allocation4 + $0x48] sm:$0xff]
    %v1645 = vld [vmem:[#allocation4 + $0x50] sm:$0xff]
    %v1646 = vld [vmem:[#allocation4 + $0x58] sm:$0xff]
    %v1647 = vld [vmem:[#allocation4 + $0x60] sm:$0xff]
    %v1648 = vld [vmem:[#allocation4 + $0x68] sm:$0xff]
    %v1649 = vld [vmem:[#allocation4 + $0x70] sm:$0xff]
    %v1650 = vld [vmem:[#allocation4 + $0x78] sm:$0xff]
    %v1651 = vld [vmem:[#allocation4 + $0x80] sm:$0xff]
    %v1652 = vld [vmem:[#allocation4 + $0x88] sm:$0xff]
    %v1653 = vld [vmem:[#allocation4 + $0x90] sm:$0xff]
    %v1654 = vld [vmem:[#allocation4 + $0x98] sm:$0xff]
    %v1655 = vld [vmem:[#allocation4 + $0xa0] sm:$0xff]
    %v1656 = vld [vmem:[#allocation4 + $0xa8] sm:$0xff]
    %v1657 = vld [vmem:[#allocation4 + $0xb0] sm:$0xff]
    %v1658 = vld [vmem:[#allocation4 + $0xb8] sm:$0xff]
    %v1659 = vld [vmem:[#allocation4 + $0xc0] sm:$0xff]
    %v1660 = vld [vmem:[#allocation4 + $0xc8] sm:$0xff]
    %v1661 = vld [vmem:[#allocation4 + $0xd0] sm:$0xff]
    %v1662 = vld [vmem:[#allocation4 + $0xd8] sm:$0xff]
    %v1663 = vld [vmem:[#allocation4 + $0xe0] sm:$0xff]
    %v1664 = vld [vmem:[#allocation4 + $0xe8] sm:$0xff]
    %v1665 = vld [vmem:[#allocation4 + $0xf0] sm:$0xff]
    %v1666 = vld [vmem:[#allocation4 + $0xf8] sm:$0xff]
    %v1667 = vld [vmem:[#allocation4 + $0x100] sm:$0xff]
    %v1668 = vld [vmem:[#allocation4 + $0x108] sm:$0xff]
    %v1669 = vld [vmem:[#allocation4 + $0x110] sm:$0xff]
    %v1670 = vld [vmem:[#allocation4 + $0x118] sm:$0xff]
    %v1671 = vld [vmem:[#allocation4 + $0x120] sm:$0xff]
    %v1672 = vld [vmem:[#allocation4 + $0x128] sm:$0xff]
    %v1673 = vld [vmem:[#allocation4 + $0x130] sm:$0xff]
    %v1674 = vld [vmem:[#allocation4 + $0x138] sm:$0xff]
    %v1675 = vld [vmem:[#allocation4 + $0x140] sm:$0xff]
    %v1676 = vld [vmem:[#allocation4 + $0x148] sm:$0xff]
    %v1677 = vld [vmem:[#allocation4 + $0x150] sm:$0xff]
    %v1678 = vld [vmem:[#allocation4 + $0x158] sm:$0xff]
    %v1679 = vld [vmem:[#allocation4 + $0x160] sm:$0xff]
    %v1680 = vld [vmem:[#allocation4 + $0x168] sm:$0xff]
    %v1681 = vld [vmem:[#allocation4 + $0x170] sm:$0xff]
    %v1682 = vld [vmem:[#allocation4 + $0x178] sm:$0xff]
    %v1683 = vld [vmem:[#allocation4 + $0x180] sm:$0xff]
    %v1684 = vld [vmem:[#allocation4 + $0x188] sm:$0xff]
    %v1685 = vld [vmem:[#allocation4 + $0x190] sm:$0xff]
    %v1686 = vld [vmem:[#allocation4 + $0x198] sm:$0xff]
    %v1687 = vld [vmem:[#allocation4 + $0x1a0] sm:$0xff]
    %v1688 = vld [vmem:[#allocation4 + $0x1a8] sm:$0xff]
    %v1689 = vld [vmem:[#allocation4 + $0x1b0] sm:$0xff]
    %v1690 = vld [vmem:[#allocation4 + $0x1b8] sm:$0xff]
    %v1691 = vld [vmem:[#allocation4 + $0x1c0] sm:$0xff]
    %v1692 = vld [vmem:[#allocation4 + $0x1c8] sm:$0xff]
    %v1693 = vld [vmem:[#allocation4 + $0x1d0] sm:$0xff]
    %v1694 = vld [vmem:[#allocation4 + $0x1d8] sm:$0xff]
    %v1695 = vld [vmem:[#allocation4 + $0x1e0] sm:$0xff]
    %v1696 = vld [vmem:[#allocation4 + $0x1e8] sm:$0xff]
    %v1697 = vld [vmem:[#allocation4 + $0x1f0] sm:$0xff]
    %v1698 = vld [vmem:[#allocation4 + $0x1f8] sm:$0xff]
    %v1699 = vld [vmem:[%s4] sm:$0x3]
    %v1701 = vperm.slane %v1699, 0
    %v1702 = vperm.slane %v1699, 1
    %v1769 = vunpack.c.l.b16 %v1635
    %v1770 = vunpack.c.h.b16 %v1635
    %v1771 = vunpack.c.l.b16 %v1636
    %v1772 = vunpack.c.h.b16 %v1636
    %v1773 = vunpack.c.l.b16 %v1637
    %v1774 = vunpack.c.h.b16 %v1637
    %v1775 = vunpack.c.l.b16 %v1638
    %v1776 = vunpack.c.h.b16 %v1638
    %v1777 = vunpack.c.l.b16 %v1639
    %v1778 = vunpack.c.h.b16 %v1639
    %v1779 = vunpack.c.l.b16 %v1640
    %v1780 = vunpack.c.h.b16 %v1640
    %v1781 = vunpack.c.l.b16 %v1641
    %v1782 = vunpack.c.h.b16 %v1641
    %v1783 = vunpack.c.l.b16 %v1642
    %v1784 = vunpack.c.h.b16 %v1642
    %v1785 = vunpack.c.l.b16 %v1643
    %v1786 = vunpack.c.h.b16 %v1643
    %v1787 = vunpack.c.l.b16 %v1644
    %v1788 = vunpack.c.h.b16 %v1644
    %v1789 = vunpack.c.l.b16 %v1645
    %v1790 = vunpack.c.h.b16 %v1645
    %v1791 = vunpack.c.l.b16 %v1646
    %v1792 = vunpack.c.h.b16 %v1646
    %v1793 = vunpack.c.l.b16 %v1647
    %v1794 = vunpack.c.h.b16 %v1647
    %v1795 = vunpack.c.l.b16 %v1648
    %v1796 = vunpack.c.h.b16 %v1648
    %v1797 = vunpack.c.l.b16 %v1649
    %v1798 = vunpack.c.h.b16 %v1649
    %v1799 = vunpack.c.l.b16 %v1650
    %v1800 = vunpack.c.h.b16 %v1650
    %v1801 = vunpack.c.l.b16 %v1651
    %v1802 = vunpack.c.h.b16 %v1651
    %v1803 = vunpack.c.l.b16 %v1652
    %v1804 = vunpack.c.h.b16 %v1652
    %v1805 = vunpack.c.l.b16 %v1653
    %v1806 = vunpack.c.h.b16 %v1653
    %v1807 = vunpack.c.l.b16 %v1654
    %v1808 = vunpack.c.h.b16 %v1654
    %v1809 = vunpack.c.l.b16 %v1655
    %v1810 = vunpack.c.h.b16 %v1655
    %v1811 = vunpack.c.l.b16 %v1656
    %v1812 = vunpack.c.h.b16 %v1656
    %v1813 = vunpack.c.l.b16 %v1657
    %v1814 = vunpack.c.h.b16 %v1657
    %v1815 = vunpack.c.l.b16 %v1658
    %v1816 = vunpack.c.h.b16 %v1658
    %v1817 = vunpack.c.l.b16 %v1659
    %v1818 = vunpack.c.h.b16 %v1659
    %v1819 = vunpack.c.l.b16 %v1660
    %v1820 = vunpack.c.h.b16 %v1660
    %v1821 = vunpack.c.l.b16 %v1661
    %v1822 = vunpack.c.h.b16 %v1661
    %v1823 = vunpack.c.l.b16 %v1662
    %v1824 = vunpack.c.h.b16 %v1662
    %v1825 = vunpack.c.l.b16 %v1663
    %v1826 = vunpack.c.h.b16 %v1663
    %v1827 = vunpack.c.l.b16 %v1664
    %v1828 = vunpack.c.h.b16 %v1664
    %v1829 = vunpack.c.l.b16 %v1665
    %v1830 = vunpack.c.h.b16 %v1665
    %v1831 = vunpack.c.l.b16 %v1666
    %v1832 = vunpack.c.h.b16 %v1666
    %v1833 = vunpack.c.l.b16 %v1667
    %v1834 = vunpack.c.h.b16 %v1667
    %v1835 = vunpack.c.l.b16 %v1668
    %v1836 = vunpack.c.h.b16 %v1668
    %v1837 = vunpack.c.l.b16 %v1669
    %v1838 = vunpack.c.h.b16 %v1669
    %v1839 = vunpack.c.l.b16 %v1670
    %v1840 = vunpack.c.h.b16 %v1670
    %v1841 = vunpack.c.l.b16 %v1671
    %v1842 = vunpack.c.h.b16 %v1671
    %v1843 = vunpack.c.l.b16 %v1672
    %v1844 = vunpack.c.h.b16 %v1672
    %v1845 = vunpack.c.l.b16 %v1673
    %v1846 = vunpack.c.h.b16 %v1673
    %v1847 = vunpack.c.l.b16 %v1674
    %v1848 = vunpack.c.h.b16 %v1674
    %v1849 = vunpack.c.l.b16 %v1675
    %v1850 = vunpack.c.h.b16 %v1675
    %v1851 = vunpack.c.l.b16 %v1676
    %v1852 = vunpack.c.h.b16 %v1676
    %v1853 = vunpack.c.l.b16 %v1677
    %v1854 = vunpack.c.h.b16 %v1677
    %v1855 = vunpack.c.l.b16 %v1678
    %v1856 = vunpack.c.h.b16 %v1678
    %v1857 = vunpack.c.l.b16 %v1679
    %v1858 = vunpack.c.h.b16 %v1679
    %v1859 = vunpack.c.l.b16 %v1680
    %v1860 = vunpack.c.h.b16 %v1680
    %v1861 = vunpack.c.l.b16 %v1681
    %v1862 = vunpack.c.h.b16 %v1681
    %v1863 = vunpack.c.l.b16 %v1682
    %v1864 = vunpack.c.h.b16 %v1682
    %v1865 = vunpack.c.l.b16 %v1683
    %v1866 = vunpack.c.h.b16 %v1683
    %v1867 = vunpack.c.l.b16 %v1684
    %v1868 = vunpack.c.h.b16 %v1684
    %v1869 = vunpack.c.l.b16 %v1685
    %v1870 = vunpack.c.h.b16 %v1685
    %v1871 = vunpack.c.l.b16 %v1686
    %v1872 = vunpack.c.h.b16 %v1686
    %v1873 = vunpack.c.l.b16 %v1687
    %v1874 = vunpack.c.h.b16 %v1687
    %v1875 = vunpack.c.l.b16 %v1688
    %v1876 = vunpack.c.h.b16 %v1688
    %v1877 = vunpack.c.l.b16 %v1689
    %v1878 = vunpack.c.h.b16 %v1689
    %v1879 = vunpack.c.l.b16 %v1690
    %v1880 = vunpack.c.h.b16 %v1690
    %v1881 = vunpack.c.l.b16 %v1691
    %v1882 = vunpack.c.h.b16 %v1691
    %v1883 = vunpack.c.l.b16 %v1692
    %v1884 = vunpack.c.h.b16 %v1692
    %v1885 = vunpack.c.l.b16 %v1693
    %v1886 = vunpack.c.h.b16 %v1693
    %v1887 = vunpack.c.l.b16 %v1694
    %v1888 = vunpack.c.h.b16 %v1694
    %v1889 = vunpack.c.l.b16 %v1695
    %v1890 = vunpack.c.h.b16 %v1695
    %v1891 = vunpack.c.l.b16 %v1696
    %v1892 = vunpack.c.h.b16 %v1696
    %v1893 = vunpack.c.l.b16 %v1697
    %v1894 = vunpack.c.h.b16 %v1697
    %v1895 = vunpack.c.l.b16 %v1698
    %v1896 = vunpack.c.h.b16 %v1698
    %v1897 = vpack.c.b16 %v1771, %v1769
    %v1898 = vpack.c.b16 %v1772, %v1770
    %v1899 = vpack.c.b16 %v1775, %v1773
    %v1900 = vpack.c.b16 %v1776, %v1774
    %v1901 = vpack.c.b16 %v1779, %v1777
    %v1902 = vpack.c.b16 %v1780, %v1778
    %v1903 = vpack.c.b16 %v1783, %v1781
    %v1904 = vpack.c.b16 %v1784, %v1782
    %v1905 = vpack.c.b16 %v1787, %v1785
    %v1906 = vpack.c.b16 %v1788, %v1786
    %v1907 = vpack.c.b16 %v1791, %v1789
    %v1908 = vpack.c.b16 %v1792, %v1790
    %v1909 = vpack.c.b16 %v1795, %v1793
    %v1910 = vpack.c.b16 %v1796, %v1794
    %v1911 = vpack.c.b16 %v1799, %v1797
    %v1912 = vpack.c.b16 %v1800, %v1798
    %v1913 = vpack.c.b16 %v1803, %v1801
    %v1914 = vpack.c.b16 %v1804, %v1802
    %v1915 = vpack.c.b16 %v1807, %v1805
    %v1916 = vpack.c.b16 %v1808, %v1806
    %v1917 = vpack.c.b16 %v1811, %v1809
    %v1918 = vpack.c.b16 %v1812, %v1810
    %v1919 = vpack.c.b16 %v1815, %v1813
    %v1920 = vpack.c.b16 %v1816, %v1814
    %v1921 = vpack.c.b16 %v1819, %v1817
    %v1922 = vpack.c.b16 %v1820, %v1818
    %v1923 = vpack.c.b16 %v1823, %v1821
    %v1924 = vpack.c.b16 %v1824, %v1822
    %v1925 = vpack.c.b16 %v1827, %v1825
    %v1926 = vpack.c.b16 %v1828, %v1826
    %v1927 = vpack.c.b16 %v1831, %v1829
    %v1928 = vpack.c.b16 %v1832, %v1830
    %v1929 = vpack.c.b16 %v1835, %v1833
    %v1930 = vpack.c.b16 %v1836, %v1834
    %v1931 = vpack.c.b16 %v1839, %v1837
    %v1932 = vpack.c.b16 %v1840, %v1838
    %v1933 = vpack.c.b16 %v1843, %v1841
    %v1934 = vpack.c.b16 %v1844, %v1842
    %v1935 = vpack.c.b16 %v1847, %v1845
    %v1936 = vpack.c.b16 %v1848, %v1846
    %v1937 = vpack.c.b16 %v1851, %v1849
    %v1938 = vpack.c.b16 %v1852, %v1850
    %v1939 = vpack.c.b16 %v1855, %v1853
    %v1940 = vpack.c.b16 %v1856, %v1854
    %v1941 = vpack.c.b16 %v1859, %v1857
    %v1942 = vpack.c.b16 %v1860, %v1858
    %v1943 = vpack.c.b16 %v1863, %v1861
    %v1944 = vpack.c.b16 %v1864, %v1862
    %v1945 = vpack.c.b16 %v1867, %v1865
    %v1946 = vpack.c.b16 %v1868, %v1866
    %v1947 = vpack.c.b16 %v1871, %v1869
    %v1948 = vpack.c.b16 %v1872, %v1870
    %v1949 = vpack.c.b16 %v1875, %v1873
    %v1950 = vpack.c.b16 %v1876, %v1874
    %v1951 = vpack.c.b16 %v1879, %v1877
    %v1952 = vpack.c.b16 %v1880, %v1878
    %v1953 = vpack.c.b16 %v1883, %v1881
    %v1954 = vpack.c.b16 %v1884, %v1882
    %v1955 = vpack.c.b16 %v1887, %v1885
    %v1956 = vpack.c.b16 %v1888, %v1886
    %v1957 = vpack.c.b16 %v1891, %v1889
    %v1958 = vpack.c.b16 %v1892, %v1890
    %v1959 = vpack.c.b16 %v1895, %v1893
    %v1960 = vpack.c.b16 %v1896, %v1894
    %2025 = vmatpush.bf16.msra.mxu0 %v1911
    %2026 = vmatpush.bf16.msra.mxu0 %v1909
    %2027 = vmatpush.bf16.msra.mxu0 %v1907
    %2028 = vmatpush.bf16.msra.mxu0 %v1905
    %2029 = vmatpush.bf16.msra.mxu0 %v1903
    %2030 = vmatpush.bf16.msra.mxu0 %v1901
    %2031 = vmatpush.bf16.msra.mxu0 %v1899
    %2032 = vmatpush.bf16.msra.mxu0 %v1897
    %2033 = vmatmul.bf16.gmra.mxu0 %v1631
    %v2034 = vpop.f32.mrf.mxu0
    %v2035 = vadd.f32 %v1701, %v2034
    %v2036 = vpop.f32.mrf.mxu0
    %2037 = vdwg.mxu0
    %2038 = vmatpush.bf16.msra.mxu0 %v1927
    %2039 = vmatpush.bf16.msra.mxu0 %v1925
    %2040 = vmatpush.bf16.msra.mxu0 %v1923
    %2041 = vmatpush.bf16.msra.mxu0 %v1921
    %2042 = vmatpush.bf16.msra.mxu0 %v1919
    %2043 = vmatpush.bf16.msra.mxu0 %v1917
    %2044 = vmatpush.bf16.msra.mxu0 %v1915
    %2045 = vmatpush.bf16.msra.mxu0 %v1913
    %2046 = vmatmul.bf16.gmra.mxu0 %v1632
    %v2047 = vpop.f32.mrf.mxu0
    %v2048 = vadd.f32 %v2035, %v2047
    %v2049 = vpop.f32.mrf.mxu0
    %2050 = vdwg.mxu0
    %2051 = vmatpush.bf16.msra.mxu0 %v1943
    %2052 = vmatpush.bf16.msra.mxu0 %v1941
    %2053 = vmatpush.bf16.msra.mxu0 %v1939
    %2054 = vmatpush.bf16.msra.mxu0 %v1937
    %2055 = vmatpush.bf16.msra.mxu0 %v1935
    %2056 = vmatpush.bf16.msra.mxu0 %v1933
    %2057 = vmatpush.bf16.msra.mxu0 %v1931
    %2058 = vmatpush.bf16.msra.mxu0 %v1929
    %2059 = vmatmul.bf16.gmra.mxu0 %v1633
    %v2060 = vpop.f32.mrf.mxu0
    %v2061 = vadd.f32 %v2048, %v2060
    %v2062 = vpop.f32.mrf.mxu0
    %2063 = vdwg.mxu0
    %2064 = vmatpush.bf16.msra.mxu0 %v1959
    %2065 = vmatpush.bf16.msra.mxu0 %v1957
    %2066 = vmatpush.bf16.msra.mxu0 %v1955
    %2067 = vmatpush.bf16.msra.mxu0 %v1953
    %2068 = vmatpush.bf16.msra.mxu0 %v1951
    %2069 = vmatpush.bf16.msra.mxu0 %v1949
    %2070 = vmatpush.bf16.msra.mxu0 %v1947
    %2071 = vmatpush.bf16.msra.mxu0 %v1945
    %2072 = vmatmul.bf16.gmra.mxu0 %v1634
    %v2073 = vpop.f32.mrf.mxu0
    %v2074 = vadd.f32 %v2061, %v2073
    %v2075 = vpop.f32.mrf.mxu0
    %2076 = vdwg.mxu0
    %2077 = vmatpush.bf16.msra.mxu0 %v1912
    %2078 = vmatpush.bf16.msra.mxu0 %v1910
    %2079 = vmatpush.bf16.msra.mxu0 %v1908
    %2080 = vmatpush.bf16.msra.mxu0 %v1906
    %2081 = vmatpush.bf16.msra.mxu0 %v1904
    %2082 = vmatpush.bf16.msra.mxu0 %v1902
    %2083 = vmatpush.bf16.msra.mxu0 %v1900
    %2084 = vmatpush.bf16.msra.mxu0 %v1898
    %2085 = vmatmul.bf16.gmra.mxu0 %v1631
    %v2086 = vpop.f32.mrf.mxu0
    %v2087 = vadd.f32 %v1702, %v2086
    %v2088 = vpop.f32.mrf.mxu0
    %2089 = vdwg.mxu0
    %2090 = vmatpush.bf16.msra.mxu0 %v1928
    %2091 = vmatpush.bf16.msra.mxu0 %v1926
    %2092 = vmatpush.bf16.msra.mxu0 %v1924
    %2093 = vmatpush.bf16.msra.mxu0 %v1922
    %2094 = vmatpush.bf16.msra.mxu0 %v1920
    %2095 = vmatpush.bf16.msra.mxu0 %v1918
    %2096 = vmatpush.bf16.msra.mxu0 %v1916
    %2097 = vmatpush.bf16.msra.mxu0 %v1914
    %2098 = vmatmul.bf16.gmra.mxu0 %v1632
    %v2099 = vpop.f32.mrf.mxu0
    %v2100 = vadd.f32 %v2087, %v2099
    %v2101 = vpop.f32.mrf.mxu0
    %2102 = vdwg.mxu0
    %2103 = vmatpush.bf16.msra.mxu0 %v1944
    %2104 = vmatpush.bf16.msra.mxu0 %v1942
    %2105 = vmatpush.bf16.msra.mxu0 %v1940
    %2106 = vmatpush.bf16.msra.mxu0 %v1938
    %2107 = vmatpush.bf16.msra.mxu0 %v1936
    %2108 = vmatpush.bf16.msra.mxu0 %v1934
    %2109 = vmatpush.bf16.msra.mxu0 %v1932
    %2110 = vmatpush.bf16.msra.mxu0 %v1930
    %2111 = vmatmul.bf16.gmra.mxu0 %v1633
    %v2112 = vpop.f32.mrf.mxu0
    %v2113 = vadd.f32 %v2100, %v2112
    %v2114 = vpop.f32.mrf.mxu0
    %2115 = vdwg.mxu0
    %2116 = vmatpush.bf16.msra.mxu0 %v1960
    %2117 = vmatpush.bf16.msra.mxu0 %v1958
    %2118 = vmatpush.bf16.msra.mxu0 %v1956
    %2119 = vmatpush.bf16.msra.mxu0 %v1954
    %2120 = vmatpush.bf16.msra.mxu0 %v1952
    %2121 = vmatpush.bf16.msra.mxu0 %v1950
    %2122 = vmatpush.bf16.msra.mxu0 %v1948
    %2123 = vmatpush.bf16.msra.mxu0 %v1946
    %2124 = vmatmul.bf16.gmra.mxu0 %v1634
    %v2125 = vpop.f32.mrf.mxu0
    %v2126 = vadd.f32 %v2113, %v2125
    %v2127 = vpop.f32.mrf.mxu0
    %2128 = vdwg.mxu0
    %v2129 = vmax.f32 %v2074, 0.0
    %v2130 = vmax.f32 %v2126, 0.0
    %v2131 = vpack.c.bf16 %v2129, %v2129
    %v2132 = vpack.c.bf16 %v2130, %v2130
    %v2133 = vld [vmem:[%s5] sm:$0xf]
    %v2134 = vld [vmem:[%s5 + $0x4] sm:$0xf]
    %v2135 = vld [vmem:[%s5 + $0x8] sm:$0xf]
    %v2136 = vld [vmem:[%s5 + $0xc] sm:$0xf]
    %v2137 = vld [vmem:[%s5 + $0x10] sm:$0xf]
    %v2138 = vld [vmem:[%s5 + $0x14] sm:$0xf]
    %v2139 = vld [vmem:[%s5 + $0x18] sm:$0xf]
    %v2140 = vld [vmem:[%s5 + $0x1c] sm:$0xf]
    %v2141 = vld [vmem:[%s5 + $0x20] sm:$0xf]
    %v2142 = vld [vmem:[%s5 + $0x24] sm:$0xf]
    %v2143 = vld [vmem:[%s5 + $0x28] sm:$0xf]
    %v2144 = vld [vmem:[%s5 + $0x2c] sm:$0xf]
    %v2145 = vld [vmem:[%s5 + $0x30] sm:$0xf]
    %v2146 = vld [vmem:[%s5 + $0x34] sm:$0xf]
    %v2147 = vld [vmem:[%s5 + $0x38] sm:$0xf]
    %v2148 = vld [vmem:[%s5 + $0x3c] sm:$0xf]
    %v2149 = vld [vmem:[%s5 + $0x40] sm:$0xf]
    %v2150 = vld [vmem:[%s5 + $0x44] sm:$0xf]
    %v2151 = vld [vmem:[%s5 + $0x48] sm:$0xf]
    %v2152 = vld [vmem:[%s5 + $0x4c] sm:$0xf]
    %v2153 = vld [vmem:[%s5 + $0x50] sm:$0xf]
    %v2154 = vld [vmem:[%s5 + $0x54] sm:$0xf]
    %v2155 = vld [vmem:[%s5 + $0x58] sm:$0xf]
    %v2156 = vld [vmem:[%s5 + $0x5c] sm:$0xf]
    %v2157 = vld [vmem:[%s5 + $0x60] sm:$0xf]
    %v2158 = vld [vmem:[%s5 + $0x64] sm:$0xf]
    %v2159 = vld [vmem:[%s5 + $0x68] sm:$0xf]
    %v2160 = vld [vmem:[%s5 + $0x6c] sm:$0xf]
    %v2161 = vld [vmem:[%s5 + $0x70] sm:$0xf]
    %v2162 = vld [vmem:[%s5 + $0x74] sm:$0xf]
    %v2163 = vld [vmem:[%s5 + $0x78] sm:$0xf]
    %v2164 = vld [vmem:[%s5 + $0x7c] sm:$0xf]
    %v2165 = vld [vmem:[%s6] sm:$0x1]
    %v2167 = vperm.slane %v2165, 0
    %v2201 = vunpack.c.l.b16 %v2133
    %v2202 = vunpack.c.l.b16 %v2134
    %v2203 = vunpack.c.l.b16 %v2135
    %v2204 = vunpack.c.l.b16 %v2136
    %v2205 = vunpack.c.l.b16 %v2137
    %v2206 = vunpack.c.l.b16 %v2138
    %v2207 = vunpack.c.l.b16 %v2139
    %v2208 = vunpack.c.l.b16 %v2140
    %v2209 = vunpack.c.l.b16 %v2141
    %v2210 = vunpack.c.l.b16 %v2142
    %v2211 = vunpack.c.l.b16 %v2143
    %v2212 = vunpack.c.l.b16 %v2144
    %v2213 = vunpack.c.l.b16 %v2145
    %v2214 = vunpack.c.l.b16 %v2146
    %v2215 = vunpack.c.l.b16 %v2147
    %v2216 = vunpack.c.l.b16 %v2148
    %v2217 = vunpack.c.l.b16 %v2149
    %v2218 = vunpack.c.l.b16 %v2150
    %v2219 = vunpack.c.l.b16 %v2151
    %v2220 = vunpack.c.l.b16 %v2152
    %v2221 = vunpack.c.l.b16 %v2153
    %v2222 = vunpack.c.l.b16 %v2154
    %v2223 = vunpack.c.l.b16 %v2155
    %v2224 = vunpack.c.l.b16 %v2156
    %v2225 = vunpack.c.l.b16 %v2157
    %v2226 = vunpack.c.l.b16 %v2158
    %v2227 = vunpack.c.l.b16 %v2159
    %v2228 = vunpack.c.l.b16 %v2160
    %v2229 = vunpack.c.l.b16 %v2161
    %v2230 = vunpack.c.l.b16 %v2162
    %v2231 = vunpack.c.l.b16 %v2163
    %v2232 = vunpack.c.l.b16 %v2164
    %v2233 = vpack.c.b16 %v2202, %v2201
    %v2234 = vpack.c.b16 %v2204, %v2203
    %v2235 = vpack.c.b16 %v2206, %v2205
    %v2236 = vpack.c.b16 %v2208, %v2207
    %v2237 = vpack.c.b16 %v2210, %v2209
    %v2238 = vpack.c.b16 %v2212, %v2211
    %v2239 = vpack.c.b16 %v2214, %v2213
    %v2240 = vpack.c.b16 %v2216, %v2215
    %v2241 = vpack.c.b16 %v2218, %v2217
    %v2242 = vpack.c.b16 %v2220, %v2219
    %v2243 = vpack.c.b16 %v2222, %v2221
    %v2244 = vpack.c.b16 %v2224, %v2223
    %v2245 = vpack.c.b16 %v2226, %v2225
    %v2246 = vpack.c.b16 %v2228, %v2227
    %v2247 = vpack.c.b16 %v2230, %v2229
    %v2248 = vpack.c.b16 %v2232, %v2231
    %2265 = vmatpush.bf16.msra.mxu0 %v2240
    %2266 = vmatpush.bf16.msra.mxu0 %v2239
    %2267 = vmatpush.bf16.msra.mxu0 %v2238
    %2268 = vmatpush.bf16.msra.mxu0 %v2237
    %2269 = vmatpush.bf16.msra.mxu0 %v2236
    %2270 = vmatpush.bf16.msra.mxu0 %v2235
    %2271 = vmatpush.bf16.msra.mxu0 %v2234
    %2272 = vmatpush.bf16.msra.mxu0 %v2233
    %2273 = vmatmul.bf16.gmra.mxu0 %v2131
    %v2274 = vpop.f32.mrf.mxu0
    %v2275 = vadd.f32 %v2167, %v2274
    %v2276 = vpop.f32.mrf.mxu0
    %2277 = vdwg.mxu0
    %2278 = vmatpush.bf16.msra.mxu0 %v2248
    %2279 = vmatpush.bf16.msra.mxu0 %v2247
    %2280 = vmatpush.bf16.msra.mxu0 %v2246
    %2281 = vmatpush.bf16.msra.mxu0 %v2245
    %2282 = vmatpush.bf16.msra.mxu0 %v2244
    %2283 = vmatpush.bf16.msra.mxu0 %v2243
    %2284 = vmatpush.bf16.msra.mxu0 %v2242
    %2285 = vmatpush.bf16.msra.mxu0 %v2241
    %2286 = vmatmul.bf16.gmra.mxu0 %v2132
    %v2287 = vpop.f32.mrf.mxu0
    %v2288 = vadd.f32 %v2275, %v2287
    %v2289 = vpop.f32.mrf.mxu0
    %2290 = vdwg.mxu0
    %v2291 = vpack.c.bf16 %v2288, %v2288
    %2292 = vst [vmem:[%s7] sm:$0xf] %v2291
    // Predicated region
    $region38: #{neural_network_forward.1} parent=1 // pred_check
      _
    $region39: #{neural_network_forward.1} parent=1 // pred_check_branch
      %2294 = sbr.rel (0) target = $region41
    $region40: #{neural_network_forward.1} parent=1 // pred_region
      _
    $region41: #{neural_network_forward.1} parent=1 // pred_fallthru
      _
    // Predicated region
    $region42: #{neural_network_forward.1} parent=1 // pred_check
      _
    $region43: #{neural_network_forward.1} parent=1 // pred_check_branch
      %2296 = sbr.rel (0) target = $region45
    $region44: #{neural_network_forward.1} parent=1 // pred_region
      _
    $region45: #{neural_network_forward.1} parent=1 // pred_fallthru
      _
    %2297 = vsyncpa [#allocation3], 1
    %2298 = vsyncpa [#allocation5], 1

</llo_original>
